<compile_context>
chip_gen: v5e
topology: v5e:2x2
jax: 0.10.0
libtpu: 0.0.40
codegen_flags: <defaults>
</compile_context>

<pallas_src>
import functools

import jax
import jax.numpy as jnp
from jax.experimental import pallas as pl
from jax.experimental.pallas import tpu as pltpu


# bf16 weights into the MXU (f32 accumulate) ~halves the per-step h @ W_hh
# latency on v6e/v7x and halves weight VMEM / DMA.  jnp.float32 for exact f32.
_MATMUL_DTYPE = jnp.bfloat16

# Single-buffer constant weight blocks (their index_map never changes, so
# double-buffering only wastes VMEM -- critical on v7x's 64 MiB).  Reset to
# False automatically if this JAX build rejects pipeline_mode=pl.Buffered(1).
_SINGLE_BUFFER_WEIGHTS = True


def _round_up(n, m):
    return ((n + m - 1) // m) * m


def _run_with_fallback(run):
    """run(single_buffer: bool) -> result, retried without single-buffering."""
    global _SINGLE_BUFFER_WEIGHTS
    if _SINGLE_BUFFER_WEIGHTS:
        try:
            return run(True)
        except Exception:
            _SINGLE_BUFFER_WEIGHTS = False
    return run(False)


def _tensorcores_per_chip():
    """Best-effort query; >= 2 only on megacore parts (e.g. v7x)."""
    try:
        info = pltpu.get_tpu_info()
        for name in ("num_cores", "num_tensorcores", "tensorcores_per_chip"):
            n = getattr(info, name, None)
            if isinstance(n, int) and n >= 1:
                return n
    except Exception:
        pass
    return 1


def _vmem_limit(block_bytes, scratch_bytes):
    est = 2 * block_bytes + scratch_bytes + (4 << 20)
    return int(min(64 << 20, max(est, 32 << 20)))


# ---------------------------------------------------------------------------
# ATN with max_length=1: per-row biased layer-norm over the feature axis
# (weight=1, bias=0).  Two-pass variance matches torch.var(unbiased=False).
# ---------------------------------------------------------------------------
def _atn_norm(x, eps=1e-5):
    mean = jnp.mean(x, axis=-1, keepdims=True)
    centered = x - mean
    var = jnp.mean(centered * centered, axis=-1, keepdims=True)
    return centered * jax.lax.rsqrt(var + eps)


# ---------------------------------------------------------------------------
# Kernel 1: hoisted input projection  norm(x @ W_ih + b_x)  over all T*B rows.
# ---------------------------------------------------------------------------
def _input_proj_kernel(x_ref, w_ref, b_ref, out_ref):
    x = x_ref[...].astype(w_ref.dtype)
    wi = jnp.dot(x, w_ref[...], preferred_element_type=jnp.float32)
    out_ref[...] = _atn_norm(wi + b_ref[...])


def _pick_tile_m(m):
    mp = _round_up(m, 8)
    for t in (256, 128, 64):
        if t <= mp and mp % t == 0:
            return t, mp
    if mp <= 256:
        return mp, mp
    return 256, _round_up(mp, 256)


def atn_input_projection(x_flat, wih, bx):
    """x_flat: (M, Din) f32;  wih: (Din, 4H);  bx: (1, 4H).  -> (M, 4H) f32."""
    m, din = x_flat.shape
    g4 = wih.shape[1]

    # Lane-dense K: pad Din to a multiple of 128 (zero rows of W_ih are inert).
    dpad = _round_up(din, 128)
    if dpad != din:
        x_flat = jnp.pad(x_flat, ((0, 0), (0, dpad - din)))
        wih = jnp.pad(wih, ((0, dpad - din), (0, 0)))

    tile_m, m_pad = _pick_tile_m(m)
    if m_pad != m:
        x_flat = jnp.pad(x_flat, ((0, m_pad - m), (0, 0)))

    wbytes = jnp.dtype(wih.dtype).itemsize
    block_bytes = (tile_m * dpad * 4 + tile_m * g4 * 4
                   + dpad * g4 * wbytes + g4 * 4)
    vmem_limit = _vmem_limit(block_bytes, 0)

    def run(single_buffer):
        def const_spec(shape, imap):
            if single_buffer:
                return pl.BlockSpec(shape, imap, pipeline_mode=pl.Buffered(1))
            return pl.BlockSpec(shape, imap)

        return pl.pallas_call(
            _input_proj_kernel,
            out_shape=jax.ShapeDtypeStruct((m_pad, g4), jnp.float32),
            grid_spec=pltpu.PrefetchScalarGridSpec(
                num_scalar_prefetch=0,
                grid=(m_pad // tile_m,),
                in_specs=[
                    pl.BlockSpec((tile_m, dpad), lambda i: (i, 0)),
                    const_spec((dpad, g4), lambda i: (0, 0)),   # W_ih (constant)
                    const_spec((1, g4), lambda i: (0, 0)),      # bias_x
                ],
                out_specs=pl.BlockSpec((tile_m, g4), lambda i: (i, 0)),
            ),
            compiler_params=pltpu.CompilerParams(
                dimension_semantics=("parallel",),
                vmem_limit_bytes=vmem_limit),
        )(x_flat, wih, bx)

    out = _run_with_fallback(run)
    return out[:m] if m_pad != m else out


# ---------------------------------------------------------------------------
# Kernel 2: serial ATN-LSTM recurrence over time chunks, fed pre-normed wi.
# Grid = (batch_blocks, n_chunks); h/c carries live in VMEM scratch.
# ---------------------------------------------------------------------------
def _atn_lstm_recurrent_kernel(wi_ref, whh_ref, bh_ref, h0_ref, c0_ref,
                               out_ref, hT_ref, cT_ref,
                               h_scr, c_scr,
                               *, hidden_size, chunk, seq_len, ragged, unroll):
    H = hidden_size
    Tc = chunk
    Bb = h0_ref.shape[0]
    c_idx = pl.program_id(1)                 # sequential time-chunk axis

    # Initialize the recurrent carry on the first chunk of this batch block.
    @pl.when(c_idx == 0)
    def _():
        h_scr[...] = h0_ref[...]
        c_scr[...] = c0_ref[...]

    # Loop invariants hoisted out of the per-step loop.
    whh = whh_ref[...]                                    # (H, 4H)
    bhB = jnp.broadcast_to(bh_ref[...], (Bb, 4 * H))      # hoisted broadcast

    if ragged:
        lim = jnp.minimum(Tc, seq_len - c_idx * Tc)       # valid steps here

    def step(tt, carry):
        h, c = carry
        wi_n = wi_ref[tt]                                 # pre-normed (Bb, 4H)
        wh = jnp.dot(h.astype(whh.dtype), whh,
                     preferred_element_type=jnp.float32)
        s = _atn_norm(wh + bhB) + wi_n                    # (Bb, 4H)
        f = s[:, 0 * H:1 * H]
        i = s[:, 1 * H:2 * H]
        o = s[:, 2 * H:3 * H]
        g = s[:, 3 * H:4 * H]
        c1 = jax.nn.sigmoid(f) * c + jax.nn.sigmoid(i) * jnp.tanh(g)
        h1 = jax.nn.sigmoid(o) * jnp.tanh(_atn_norm(c1))
        if ragged:
            keep = tt < lim
            h1 = jnp.where(keep, h1, h)                   # freeze padded steps
            c1 = jnp.where(keep, c1, c)
        out_ref[tt] = h1
        return (h1, c1)

    h_fin, c_fin = jax.lax.fori_loop(0, Tc, step, (h_scr[...], c_scr[...]),
                                     unroll=unroll)
    h_scr[...] = h_fin
    c_scr[...] = c_fin

    # Final states written once, on the last chunk.
    @pl.when(c_idx == pl.num_programs(1) - 1)
    def _():
        hT_ref[...] = h_fin
        cT_ref[...] = c_fin


def atn_lstm_recurrent(wi, whh, bh, h0, c0, *, max_chunk=32, unroll=8,
                       batch_blocks=None):
    """wi: (T, B, 4H) pre-normed; whh: (H, 4H); bh: (1, 4H); h0/c0: (B, H)."""
    T, B, G4 = wi.shape
    H = whh.shape[0]
    assert G4 == 4 * H

    # Cap the chunk so the wi input block stays comfortably inside VMEM.
    tc_cap = max(1, (8 << 20) // max(1, B * G4 * 4))
    Tc = max(1, min(max_chunk, T, tc_cap))
    n_chunks = (T + Tc - 1) // Tc
    T_pad = n_chunks * Tc
    ragged = T_pad != T
    if ragged:
        wi = jnp.pad(wi, ((0, T_pad - T), (0, 0), (0, 0)))

    # Second TensorCore (v7x megacore): split batch only when each half keeps
    # >= 8 f32 sublanes AND the part actually has two cores (on 1-TC chips this
    # would just double the serial step count).
    if batch_blocks is None:
        batch_blocks = 2 if (B % 16 == 0 and _tensorcores_per_chip() >= 2) else 1
    Bb = batch_blocks
    B_blk = B // Bb

    kernel = functools.partial(
        _atn_lstm_recurrent_kernel, hidden_size=H, chunk=Tc, seq_len=T,
        ragged=ragged, unroll=min(unroll, Tc))

    wbytes = jnp.dtype(whh.dtype).itemsize
    block_bytes = (Tc * B_blk * G4 * 4        # wi chunk
                   + Tc * B_blk * H * 4       # output chunk
                   + H * G4 * wbytes          # W_hh
                   + G4 * 4                   # bias_h
                   + 4 * B_blk * H * 4)       # h0, c0, hT, cT
    scratch_bytes = 2 * B_blk * H * 4
    vmem_limit = _vmem_limit(block_bytes, scratch_bytes)

    def run(single_buffer):
        def const_spec(shape, imap):
            if single_buffer:
                return pl.BlockSpec(shape, imap, pipeline_mode=pl.Buffered(1))
            return pl.BlockSpec(shape, imap)

        return pl.pallas_call(
            kernel,
            out_shape=(jax.ShapeDtypeStruct((T_pad, B, H), jnp.float32),
                       jax.ShapeDtypeStruct((B, H), jnp.float32),
                       jax.ShapeDtypeStruct((B, H), jnp.float32)),
            grid_spec=pltpu.PrefetchScalarGridSpec(
                num_scalar_prefetch=0,
                grid=(Bb, n_chunks),
                in_specs=[
                    pl.BlockSpec((Tc, B_blk, G4), lambda b, c: (c, b, 0)),  # wi
                    const_spec((H, G4), lambda b, c: (0, 0)),               # W_hh
                    const_spec((1, G4), lambda b, c: (0, 0)),               # bias_h
                    pl.BlockSpec((B_blk, H), lambda b, c: (b, 0)),          # h0
                    pl.BlockSpec((B_blk, H), lambda b, c: (b, 0)),          # c0
                ],
                out_specs=[
                    pl.BlockSpec((Tc, B_blk, H), lambda b, c: (c, b, 0)),   # out
                    pl.BlockSpec((B_blk, H), lambda b, c: (b, 0)),          # h_T
                    pl.BlockSpec((B_blk, H), lambda b, c: (b, 0)),          # c_T
                ],
                scratch_shapes=[pltpu.VMEM((B_blk, H), jnp.float32),        # h
                                pltpu.VMEM((B_blk, H), jnp.float32)],       # c
            ),
            compiler_params=pltpu.CompilerParams(
                dimension_semantics=("parallel", "arbitrary"),
                vmem_limit_bytes=vmem_limit),
        )(wi, whh, bh, h0, c0)

    out, hT, cT = _run_with_fallback(run)
    if ragged:
        out = out[:T]
    return out, hT, cT


# ---------------------------------------------------------------------------
# Parameters (matching ATN_LSTMCell.reset_parameters / RNNModel.init_weights).
# ---------------------------------------------------------------------------
def _orthogonal(key, rows, cols):
    a = jax.random.normal(key, (max(rows, cols), min(rows, cols)), jnp.float32)
    q, r = jnp.linalg.qr(a)
    q = q * jnp.sign(jnp.diagonal(r))[None, :]
    return q.T if rows < cols else q


def init_params(key, ntoken, ninp, nhid, nlayers):
    keys = jax.random.split(key, nlayers + 1)
    embedding = jax.random.uniform(keys[0], (ntoken, ninp), jnp.float32,
                                   -0.1, 0.1)
    layers = []
    for l in range(nlayers):
        din = ninp if l == 0 else nhid
        H = nhid                      # tie_weights=False -> all layers nhid
        wih = _orthogonal(keys[l + 1], din, 4 * H)            # init.orthogonal
        whh = jnp.tile(jnp.eye(H, dtype=jnp.float32), (1, 4))  # eye.repeat(1,4)
        bx = jnp.zeros((1, 4 * H), jnp.float32)
        bh = jnp.zeros((1, 4 * H), jnp.float32)
        layers.append(dict(wih=wih, whh=whh, bx=bx, bh=bh))
    return dict(embedding=embedding, layers=layers)


def rnn_model_forward(tokens, params, hidden, *, max_chunk=32):
    """tokens: (T, B) int32; hidden: list of (h0, c0), each (B, nhid)."""
    # embedded_dropout / lockdrop with p=0 == plain embedding lookup (XLA glue).
    emb = jnp.take(params["embedding"], tokens, axis=0)        # (T, B, ninp)
    raw_output = emb
    new_hidden = []
    for lp in params["layers"]:
        h0, c0 = hidden[len(new_hidden)]
        T, B, Din = raw_output.shape
        # (1) Hoisted non-recurrent projection: one big MXU matmul + ATN norm.
        wi = atn_input_projection(raw_output.reshape(T * B, Din),
                                  lp["wih"].astype(_MATMUL_DTYPE), lp["bx"])
        wi = wi.reshape(T, B, -1)
        # (2) Serial recurrence over time, fed with the pre-normed wi stream.
        raw_output, hT, cT = atn_lstm_recurrent(
            wi, lp["whh"].astype(_MATMUL_DTYPE), lp["bh"], h0, c0,
            max_chunk=max_chunk)
        new_hidden.append((hT, cT))
    T, B, H = raw_output.shape
    return raw_output.reshape(T * B, H), new_hidden            # output.view(T*B, nhid)


# ---------------------------------------------------------------------------
# Pure-JAX float32 reference (for an early-time sanity check in __main__).
# ---------------------------------------------------------------------------
def _reference_forward(tokens, params, hidden):
    x = jnp.take(params["embedding"], tokens, axis=0)
    new_hidden = []
    for l, lp in enumerate(params["layers"]):
        h, c = hidden[l]
        H = lp["whh"].shape[0]
        outs = []
        for t in range(x.shape[0]):
            wi = _atn_norm(x[t] @ lp["wih"] + lp["bx"])
            wh = _atn_norm(h @ lp["whh"] + lp["bh"])
            s = wh + wi
            f, i, o, g = s[:, :H], s[:, H:2 * H], s[:, 2 * H:3 * H], s[:, 3 * H:]
            c = jax.nn.sigmoid(f) * c + jax.nn.sigmoid(i) * jnp.tanh(g)
            h = jax.nn.sigmoid(o) * jnp.tanh(_atn_norm(c))
            outs.append(h)
        x = jnp.stack(outs, 0)
        new_hidden.append((h, c))
    T, B, H = x.shape
    return x.reshape(T * B, H), new_hidden


# ---------------------------------------------------------------------------
if __name__ == "__main__":
    # nhid multiple of 128 keeps gate slices / stores lane-dense.  T=40 with a
    # 32-step chunk exercises multi-chunk pipelining + the ragged last chunk.
    ntoken, ninp, nhid, nlayers = 50, 64, 128, 2
    T, B = 40, 8

    key = jax.random.PRNGKey(0)
    k_params, k_tok = jax.random.split(key)
    params = init_params(k_params, ntoken, ninp, nhid, nlayers)

    tokens = jax.random.randint(k_tok, (T, B), 0, ntoken, dtype=jnp.int32)
    hidden = [(jnp.zeros((B, nhid), jnp.float32),
               jnp.zeros((B, nhid), jnp.float32)) for _ in range(nlayers)]

    result, new_hidden = rnn_model_forward(tokens, params, hidden)
    jax.block_until_ready(result)
    for h, c in new_hidden:
        jax.block_until_ready(h)
        jax.block_until_ready(c)

    assert result.shape == (T * B, nhid)
    for h, c in new_hidden:
        assert h.shape == (B, nhid) and c.shape == (B, nhid)
    assert bool(jnp.all(jnp.isfinite(result)))

    # Early-time value check vs. a pure-JAX f32 reference (first two steps
    # only, before any bf16 drift can accumulate through the recurrence).
    ref_result, _ = _reference_forward(tokens, params, hidden)
    early = 2 * B
    max_diff = float(jnp.max(jnp.abs(result[:early] - ref_result[:early])))
    assert max_diff < 0.2, max_diff

    print("KERNEL_OK")
</pallas_src>

<mosaic_0001>
module attributes {stable_mosaic.version = 11 : i64} {
  func.func @_input_proj_kernel(%arg0: i32, %arg1: memref<64x128xf32, #tpu.memory_space<vmem>>, %arg2: memref<128x512xbf16, #tpu.memory_space<vmem>>, %arg3: memref<1x512xf32, #tpu.memory_space<vmem>>, %arg4: memref<64x512xf32, #tpu.memory_space<vmem>>) attributes {dimension_semantics = [#tpu.dimension_semantics<parallel>], iteration_bounds = array<i64: 5>, scalar_prefetch = 0 : i64, scratch_operands = 0 : i64, tpu.core_type = #tpu.core_type<tc>, window_params = [{transform_indices = @transform_0, window_bounds = array<i64: 64, 128>}, {pipeline_mode = #tpu.pipeline_mode<synchronous>, transform_indices = @transform_1, window_bounds = array<i64: 128, 512>}, {pipeline_mode = #tpu.pipeline_mode<synchronous>, transform_indices = @transform_2, window_bounds = array<i64: 1, 512>}, {transform_indices = @transform_3, window_bounds = array<i64: 64, 512>}]} {
    %c0 = arith.constant 0 : index
    %c0_0 = arith.constant 0 : index
    %0 = vector.load %arg1[%c0, %c0_0] : memref<64x128xf32, #tpu.memory_space<vmem>>, vector<64x128xf32>
    %1 = arith.truncf %0 : vector<64x128xf32> to vector<64x128xbf16>
    %c0_1 = arith.constant 0 : index
    %c0_2 = arith.constant 0 : index
    %2 = vector.load %arg2[%c0_1, %c0_2] : memref<128x512xbf16, #tpu.memory_space<vmem>>, vector<128x512xbf16>
    %cst = arith.constant dense<0.000000e+00> : vector<64x512xf32>
    %3 = tpu.matmul %1, %2, %cst {dimension_numbers = #tpu.dot_dimension_numbers<[1], [0], [0], [1], [0, 0, 1, 1], [], []>} : vector<64x128xbf16>, vector<128x512xbf16>, vector<64x512xf32> -> vector<64x512xf32>
    %c0_3 = arith.constant 0 : index
    %c0_4 = arith.constant 0 : index
    %4 = vector.load %arg3[%c0_3, %c0_4] : memref<1x512xf32, #tpu.memory_space<vmem>>, vector<1x512xf32>
    %5 = vector.broadcast %4 : vector<1x512xf32> to vector<64x512xf32>
    %6 = arith.addf %3, %5 : vector<64x512xf32>
    %cst_5 = arith.constant dense<0.000000e+00> : vector<64xf32>
    %7 = vector.multi_reduction <add>, %6, %cst_5 [1] : vector<64x512xf32> to vector<64xf32>
    %8 = vector.shape_cast %7 : vector<64xf32> to vector<64x1xf32>
    %cst_6 = arith.constant 5.120000e+02 : f32
    %9 = vector.broadcast %cst_6 : f32 to vector<64x1xf32>
    %10 = arith.divf %8, %9 : vector<64x1xf32>
    %11 = vector.broadcast %10 : vector<64x1xf32> to vector<64x512xf32>
    %12 = arith.subf %6, %11 : vector<64x512xf32>
    %13 = arith.mulf %12, %12 : vector<64x512xf32>
    %cst_7 = arith.constant dense<0.000000e+00> : vector<64xf32>
    %14 = vector.multi_reduction <add>, %13, %cst_7 [1] : vector<64x512xf32> to vector<64xf32>
    %15 = vector.shape_cast %14 : vector<64xf32> to vector<64x1xf32>
    %cst_8 = arith.constant 5.120000e+02 : f32
    %16 = vector.broadcast %cst_8 : f32 to vector<64x1xf32>
    %17 = arith.divf %15, %16 : vector<64x1xf32>
    %cst_9 = arith.constant 9.99999974E-6 : f32
    %18 = vector.broadcast %cst_9 : f32 to vector<64x1xf32>
    %19 = arith.addf %17, %18 : vector<64x1xf32>
    %20 = math.rsqrt %19 : vector<64x1xf32>
    %21 = vector.broadcast %20 : vector<64x1xf32> to vector<64x512xf32>
    %22 = arith.mulf %12, %21 : vector<64x512xf32>
    %c0_10 = arith.constant 0 : index
    %c0_11 = arith.constant 0 : index
    %23 = vector.load %arg4[%c0_10, %c0_11] : memref<64x512xf32, #tpu.memory_space<vmem>>, vector<64x512xf32>
    tpu.vector_store %arg4[%c0_10, %c0_11], %22 {strides = array<i32>} : memref<64x512xf32, #tpu.memory_space<vmem>>, vector<64x512xf32>,
    return
  }
  func.func @transform_0(%arg0: i32) -> (i32, i32) {
    %c0_i32 = arith.constant 0 : i32
    %c0_i32_0 = arith.constant 0 : i32
    return %arg0, %c0_i32 : i32, i32
  }
  func.func @transform_1(%arg0: i32) -> (i32, i32) {
    %c0_i32 = arith.constant 0 : i32
    %c0_i32_0 = arith.constant 0 : i32
    %c0_i32_1 = arith.constant 0 : i32
    return %c0_i32, %c0_i32_0 : i32, i32
  }
  func.func @transform_2(%arg0: i32) -> (i32, i32) {
    %c0_i32 = arith.constant 0 : i32
    %c0_i32_0 = arith.constant 0 : i32
    %c0_i32_1 = arith.constant 0 : i32
    return %c0_i32, %c0_i32_0 : i32, i32
  }
  func.func @transform_3(%arg0: i32) -> (i32, i32) {
    %c0_i32 = arith.constant 0 : i32
    %c0_i32_0 = arith.constant 0 : i32
    return %arg0, %c0_i32 : i32, i32
  }
}

module attributes {stable_mosaic.version = 11 : i64} {
  func.func @_input_proj_kernel(%arg0: i32, %arg1: memref<64x128xf32, #tpu.memory_space<vmem>>, %arg2: memref<128x512xbf16, #tpu.memory_space<vmem>>, %arg3: memref<1x512xf32, #tpu.memory_space<vmem>>, %arg4: memref<64x512xf32, #tpu.memory_space<vmem>>) attributes {dimension_semantics = [#tpu.dimension_semantics<parallel>], iteration_bounds = array<i64: 5>, scalar_prefetch = 0 : i64, scratch_operands = 0 : i64, tpu.core_type = #tpu.core_type<tc>, window_params = [{transform_indices = @transform_0, window_bounds = array<i64: 64, 128>}, {pipeline_mode = #tpu.pipeline_mode<synchronous>, transform_indices = @transform_1, window_bounds = array<i64: 128, 512>}, {pipeline_mode = #tpu.pipeline_mode<synchronous>, transform_indices = @transform_2, window_bounds = array<i64: 1, 512>}, {transform_indices = @transform_3, window_bounds = array<i64: 64, 512>}]} {
    %c0 = arith.constant 0 : index
    %c0_0 = arith.constant 0 : index
    %0 = vector.load %arg1[%c0, %c0_0] : memref<64x128xf32, #tpu.memory_space<vmem>>, vector<64x128xf32>
    %1 = arith.truncf %0 : vector<64x128xf32> to vector<64x128xbf16>
    %c0_1 = arith.constant 0 : index
    %c0_2 = arith.constant 0 : index
    %2 = vector.load %arg2[%c0_1, %c0_2] : memref<128x512xbf16, #tpu.memory_space<vmem>>, vector<128x512xbf16>
    %cst = arith.constant dense<0.000000e+00> : vector<64x512xf32>
    %3 = tpu.matmul %1, %2, %cst {dimension_numbers = #tpu.dot_dimension_numbers<[1], [0], [0], [1], [0, 0, 1, 1], [], []>} : vector<64x128xbf16>, vector<128x512xbf16>, vector<64x512xf32> -> vector<64x512xf32>
    %c0_3 = arith.constant 0 : index
    %c0_4 = arith.constant 0 : index
    %4 = vector.load %arg3[%c0_3, %c0_4] : memref<1x512xf32, #tpu.memory_space<vmem>>, vector<1x512xf32>
    %5 = vector.broadcast %4 : vector<1x512xf32> to vector<64x512xf32>
    %6 = arith.addf %3, %5 : vector<64x512xf32>
    %cst_5 = arith.constant dense<0.000000e+00> : vector<64xf32>
    %7 = vector.multi_reduction <add>, %6, %cst_5 [1] : vector<64x512xf32> to vector<64xf32>
    %8 = vector.shape_cast %7 : vector<64xf32> to vector<64x1xf32>
    %cst_6 = arith.constant 5.120000e+02 : f32
    %9 = vector.broadcast %cst_6 : f32 to vector<64x1xf32>
    %10 = arith.divf %8, %9 : vector<64x1xf32>
    %11 = vector.broadcast %10 : vector<64x1xf32> to vector<64x512xf32>
    %12 = arith.subf %6, %11 : vector<64x512xf32>
    %13 = arith.mulf %12, %12 : vector<64x512xf32>
    %cst_7 = arith.constant dense<0.000000e+00> : vector<64xf32>
    %14 = vector.multi_reduction <add>, %13, %cst_7 [1] : vector<64x512xf32> to vector<64xf32>
    %15 = vector.shape_cast %14 : vector<64xf32> to vector<64x1xf32>
    %cst_8 = arith.constant 5.120000e+02 : f32
    %16 = vector.broadcast %cst_8 : f32 to vector<64x1xf32>
    %17 = arith.divf %15, %16 : vector<64x1xf32>
    %cst_9 = arith.constant 9.99999974E-6 : f32
    %18 = vector.broadcast %cst_9 : f32 to vector<64x1xf32>
    %19 = arith.addf %17, %18 : vector<64x1xf32>
    %20 = math.rsqrt %19 : vector<64x1xf32>
    %21 = vector.broadcast %20 : vector<64x1xf32> to vector<64x512xf32>
    %22 = arith.mulf %12, %21 : vector<64x512xf32>
    %c0_10 = arith.constant 0 : index
    %c0_11 = arith.constant 0 : index
    %23 = vector.load %arg4[%c0_10, %c0_11] : memref<64x512xf32, #tpu.memory_space<vmem>>, vector<64x512xf32>
    tpu.vector_store %arg4[%c0_10, %c0_11], %22 {strides = array<i32>} : memref<64x512xf32, #tpu.memory_space<vmem>>, vector<64x512xf32>,
    return
  }
  func.func @transform_0(%arg0: i32) -> (i32, i32) {
    %c0_i32 = arith.constant 0 : i32
    %c0_i32_0 = arith.constant 0 : i32
    return %arg0, %c0_i32 : i32, i32
  }
  func.func @transform_1(%arg0: i32) -> (i32, i32) {
    %c0_i32 = arith.constant 0 : i32
    %c0_i32_0 = arith.constant 0 : i32
    %c0_i32_1 = arith.constant 0 : i32
    return %c0_i32, %c0_i32_0 : i32, i32
  }
  func.func @transform_2(%arg0: i32) -> (i32, i32) {
    %c0_i32 = arith.constant 0 : i32
    %c0_i32_0 = arith.constant 0 : i32
    %c0_i32_1 = arith.constant 0 : i32
    return %c0_i32, %c0_i32_0 : i32, i32
  }
  func.func @transform_3(%arg0: i32) -> (i32, i32) {
    %c0_i32 = arith.constant 0 : i32
    %c0_i32_0 = arith.constant 0 : i32
    return %arg0, %c0_i32 : i32, i32
  }
}

</mosaic_0001>

<llo_original>
// kernel: tpu_custom_call.1
$region0: #{tpu_custom_call.1}
  #allocation0 [shape = 'u32[]', space=smem, size = 0x4, offset = 0x4, fixed_abs, tag = 'smem constant byte address 0x4 - core index']
  #allocation1 [shape = 'u32[72,128]{1,0:T(1,128)}', space=vmem, size = 0x9000, scoped, tag = 'internal scratch']
  %s0 = inlined_call_operand.hbm [shape: f32[320,128], index: 0, kind: input, shape index: {}]
  %s1 = inlined_call_operand.hbm [shape: bf16[128,512], index: 1, kind: input, shape index: {}]
  %s2 = inlined_call_operand.hbm [shape: f32[1,512], index: 2, kind: input, shape index: {}]
  %s3 = inlined_call_operand.hbm [shape: f32[320,512], index: 3, kind: output, shape index: {}]
  %s4 = sld [smem:[#allocation0]]
  $region57: #{tpu_custom_call.1} parent=0
    _
  %s6 = ssub.s32 1, %s4
  %s7 = scalar_select 0, %s6, %s4
  $region1: #{tpu_custom_call.1} parent=0
    #allocation2 [shape = 'u8[65536]{0}', space=vmem, size = 0x10000, scoped, tag = 'input window, operand 0']
    #allocation3 [shape = 's32[2]{0}', space=sflag, size = 0x8, scoped, tag = 'scoped memory for tpu_custom_call.1']
    #allocation4 [shape = 's32[2]{0}', space=sflag, size = 0x8, scoped, tag = 'scoped memory for tpu_custom_call.1']
    #allocation5 [shape = 'u8[131072]{0}', space=vmem, size = 0x20000, scoped, tag = 'input window, operand 1, single buffered']
    #allocation6 [shape = 's32[1]{0}', space=sflag, size = 0x4, scoped, tag = 'scoped memory for tpu_custom_call.1']
    #allocation7 [shape = 'u8[2048]{0}', space=vmem, size = 0x800, scoped, tag = 'input window, operand 2, single buffered']
    #allocation8 [shape = 'u8[262144]{0}', space=vmem, size = 0x40000, scoped, tag = 'output window, operand 0']
    %8 = vsyncpa [#allocation3], 0
    %s9 = scalar_lea.sflag [#allocation3], 1
    %10 = vsyncpa %s9, 0
    %11 = vsyncpa [#allocation6], 0
    %12 = vsyncpa [#allocation4], 0
    %s13 = scalar_lea.sflag [#allocation4], 1
    %14 = vsyncpa %s13, 0
    loop: start=0, step=1, limit=7
    $region2: #{tpu_custom_call.1} parent=1 // loop_pre_header
      _
    $region3: #{tpu_custom_call.1} parent=1 // loop_header
      %s16 = sphi 0, %s20
      %p17 = scmp.ge.s32.totalorder %s16, 7
      %s26 = sphi 0, %s28
      %s29 = sphi 0, %s26
      %s30 = sphi 0, %s29
      %s46 = sphi 0, %s30
      %s50 = sphi 0, %s50
      %s52 = sphi 0, %s50
      %s53 = sphi 0, %s52
      %s67 = sphi 0, %s53
      %s71 = sphi 0, %s71
      %s73 = sphi 0, %s71
      %s74 = sphi 0, %s73
      %s88 = sphi 0, %s74
      %s94 = sphi 0, %s96
      %s97 = sphi 0, %s94
      %s98 = sphi 0, %s97
      %s114 = sphi 0, %s98
    $region4: #{tpu_custom_call.1} parent=1 // loop_header_branch
      %19 = sbr.rel (%p17) target = $region8
    $region5: #{tpu_custom_call.1} parent=1 // loop_body
      %s21 = ssub.s32 %s16, 1
      %s22 = ssub.s32 %s16, 2
      %s23 = sadd.s32 %s16, 1
      %s24 = ssub.s32 %s16, %s23
      %p25 = scmp.eq.s32.totalorder %s24, 0
      %s27 = sadd.s32 %s26, 1
      %s28 = scalar_select %p25, %s26, %s27
      %p31 = pneg %p25
      %p32 = scmp.eq.s32.totalorder %s16, 4
      %p33 = por %p31, %p32
      %p34 = scmp.ne.s32.totalorder %s26, %s29
      %p35 = scmp.eq.s32.totalorder %s16, 0
      %p36 = por %p34, %p35
      %p37 = scmp.ne.s32.totalorder %s26, %s29
      %p38 = scmp.eq.s32.totalorder %s21, 4
      %p39 = por %p37, %p38
      %p40 = scmp.ne.s32.totalorder %s29, %s30
      %p41 = scmp.eq.s32.totalorder %s21, 0
      %p42 = por %p40, %p41
      %p43 = scmp.ne.s32.totalorder %s29, %s30
      %p44 = scmp.eq.s32.totalorder %s22, 4
      %p45 = por %p43, %p44
      %p47 = scmp.ne.s32.totalorder %s30, %s46
      %p48 = scmp.eq.s32.totalorder %s22, 0
      %p49 = por %p47, %p48
      %s51 = sadd.s32 %s50, 1
      %p54 = scmp.eq.s32.totalorder %s16, 4
      %p55 = scmp.ne.s32.totalorder %s50, %s52
      %p56 = scmp.eq.s32.totalorder %s16, 0
      %p57 = por %p55, %p56
      %p58 = scmp.ne.s32.totalorder %s50, %s52
      %p59 = scmp.eq.s32.totalorder %s21, 4
      %p60 = por %p58, %p59
      %p61 = scmp.ne.s32.totalorder %s52, %s53
      %p62 = scmp.eq.s32.totalorder %s21, 0
      %p63 = por %p61, %p62
      %p64 = scmp.ne.s32.totalorder %s52, %s53
      %p65 = scmp.eq.s32.totalorder %s22, 4
      %p66 = por %p64, %p65
      %p68 = scmp.ne.s32.totalorder %s53, %s67
      %p69 = scmp.eq.s32.totalorder %s22, 0
      %p70 = por %p68, %p69
      %s72 = sadd.s32 %s71, 1
      %p75 = scmp.eq.s32.totalorder %s16, 4
      %p76 = scmp.ne.s32.totalorder %s71, %s73
      %p77 = scmp.eq.s32.totalorder %s16, 0
      %p78 = por %p76, %p77
      %p79 = scmp.ne.s32.totalorder %s71, %s73
      %p80 = scmp.eq.s32.totalorder %s21, 4
      %p81 = por %p79, %p80
      %p82 = scmp.ne.s32.totalorder %s73, %s74
      %p83 = scmp.eq.s32.totalorder %s21, 0
      %p84 = por %p82, %p83
      %p85 = scmp.ne.s32.totalorder %s73, %s74
      %p86 = scmp.eq.s32.totalorder %s22, 4
      %p87 = por %p85, %p86
      %p89 = scmp.ne.s32.totalorder %s74, %s88
      %p90 = scmp.eq.s32.totalorder %s22, 0
      %p91 = por %p89, %p90
      %s92 = ssub.s32 %s16, %s23
      %p93 = scmp.eq.s32.totalorder %s92, 0
      %s95 = sadd.s32 %s94, 1
      %s96 = scalar_select %p93, %s94, %s95
      %p99 = pneg %p93
      %p100 = scmp.eq.s32.totalorder %s16, 4
      %p101 = por %p99, %p100
      %p102 = scmp.ne.s32.totalorder %s94, %s97
      %p103 = scmp.eq.s32.totalorder %s16, 0
      %p104 = por %p102, %p103
      %p105 = scmp.ne.s32.totalorder %s94, %s97
      %p106 = scmp.eq.s32.totalorder %s21, 4
      %p107 = por %p105, %p106
      %p108 = scmp.ne.s32.totalorder %s97, %s98
      %p109 = scmp.eq.s32.totalorder %s21, 0
      %p110 = por %p108, %p109
      %p111 = scmp.ne.s32.totalorder %s97, %s98
      %p112 = scmp.eq.s32.totalorder %s22, 4
      %p113 = por %p111, %p112
      %p115 = scmp.ne.s32.totalorder %s98, %s114
      %p116 = scmp.eq.s32.totalorder %s22, 0
      %p117 = por %p115, %p116
      %p118 = scmp.le.s32.totalorder 1, %s16
      %p119 = scmp.lt.s32.totalorder %s16, 6
      %p120 = pnand %p118, %p119
      %p121 = pneg %p120
      // Predicated region
      $region9: #{tpu_custom_call.1} parent=5 // pred_check
        _
      $region10: #{tpu_custom_call.1} parent=5 // pred_check_branch
        %123 = sbr.rel (%p120) target = $region12
      $region11: #{tpu_custom_call.1} parent=5 // pred_region
        %s124 = ssub.s32 %s16, 1
        // Predicated region
        $region13: #{tpu_custom_call.1} parent=11 // pred_check
          %p125 = pneg %p63
        $region14: #{tpu_custom_call.1} parent=11 // pred_check_branch
          %127 = sbr.rel (%p125) target = $region16
        $region15: #{tpu_custom_call.1} parent=11 // pred_region
          %129 = vsyncadd [#allocation6], 0
          %s130 = sshll.u32 %s1, 4
          %s131 = int_to_ptr.hbm [resolvable:$true] %s130
          %s132 = sshll.u32 [#allocation5], 4
          %s133 = int_to_ptr.vmem [resolvable:$true] %s132
          %138 = dma.hbm_to_vmem [thread:$0]  %s131, 4096, %s133, [#allocation6], 256, 256, 16
        $region16: #{tpu_custom_call.1} parent=11 // pred_fallthru
          _
        // Predicated region
        $region17: #{tpu_custom_call.1} parent=11 // pred_check
          %p139 = pneg %p84
        $region18: #{tpu_custom_call.1} parent=11 // pred_check_branch
          %141 = sbr.rel (%p139) target = $region20
        $region19: #{tpu_custom_call.1} parent=11 // pred_region
          %143 = vsyncadd [#allocation6], 0
          %s145 = sshll.u32 %s2, 4
          %s146 = int_to_ptr.hbm [resolvable:$true] %s145
          %s147 = sshll.u32 [#allocation7], 4
          %s148 = int_to_ptr.vmem [resolvable:$true] %s147
          %150 = dma.hbm_to_vmem [thread:$0]  %s146, 64, %s148, [#allocation6]
        $region20: #{tpu_custom_call.1} parent=11 // pred_fallthru
          _
      $region12: #{tpu_custom_call.1} parent=5 // pred_fallthru
        _
      %p151 = scmp.lt.s32.totalorder %s16, 5
      // Predicated region
      $region21: #{tpu_custom_call.1} parent=5 // pred_check
        %p152 = pneg %p151
      $region22: #{tpu_custom_call.1} parent=5 // pred_check_branch
        %154 = sbr.rel (%p152) target = $region24
      $region23: #{tpu_custom_call.1} parent=5 // pred_region
        // Predicated region
        $region25: #{tpu_custom_call.1} parent=23 // pred_check
          %p155 = pneg %p36
        $region26: #{tpu_custom_call.1} parent=23 // pred_check_branch
          %157 = sbr.rel (%p155) target = $region28
        $region27: #{tpu_custom_call.1} parent=23 // pred_region
          %s158 = sand.u32 %s26, 1
          %s159 = scalar_lea.sflag [#allocation3], %s158
          %s160 = sand.u32 %s26, 1
          %s161 = smul.addr %s160, 64
          %s162 = scalar_lea.vmem [#allocation2], %s161
          %s163 = smul.u32 8, %s16
          %165 = vsyncadd %s159, 0
          %s166 = smul.addr %s163, 8
          %s167 = scalar_lea.hbm %s0, %s166
          %s168 = sshll.u32 %s167, 4
          %s169 = int_to_ptr.hbm [resolvable:$true] %s168
          %s170 = sshll.u32 %s162, 4
          %s171 = int_to_ptr.vmem [resolvable:$true] %s170
          %176 = dma.hbm_to_vmem [thread:$0]  %s169, 1024, %s171, %s159, 128, 128, 8
        $region28: #{tpu_custom_call.1} parent=23 // pred_fallthru
          _
      $region24: #{tpu_custom_call.1} parent=5 // pred_fallthru
        _
      %p177 = scmp.le.s32.totalorder 1, %s16
      %p178 = scmp.lt.s32.totalorder %s16, 6
      %p179 = pnand %p177, %p178
      %p180 = pneg %p179
      // Predicated region
      $region29: #{tpu_custom_call.1} parent=5 // pred_check
        _
      $region30: #{tpu_custom_call.1} parent=5 // pred_check_branch
        %182 = sbr.rel (%p179) target = $region32
      $region31: #{tpu_custom_call.1} parent=5 // pred_region
        %s183 = ssub.s32 %s16, 1
        %s184 = sand.u32 %s29, 1
        %s185 = scalar_lea.sflag [#allocation3], %s184
        %s186 = sand.u32 %s29, 1
        %s187 = smul.addr %s186, 64
        %s188 = scalar_lea.vmem [#allocation2], %s187
        // Predicated region
        $region33: #{tpu_custom_call.1} parent=31 // pred_check
          %p189 = pneg %p42
        $region34: #{tpu_custom_call.1} parent=31 // pred_check_branch
          %191 = sbr.rel (%p189) target = $region36
        $region35: #{tpu_custom_call.1} parent=31 // pred_region
          %193 = dma.done %s185, 1024
        $region36: #{tpu_custom_call.1} parent=31 // pred_fallthru
          _
        // Predicated region
        $region37: #{tpu_custom_call.1} parent=31 // pred_check
          %p194 = pneg %p63
        $region38: #{tpu_custom_call.1} parent=31 // pred_check_branch
          %196 = sbr.rel (%p194) target = $region40
        $region39: #{tpu_custom_call.1} parent=31 // pred_region
          %198 = dma.done [#allocation6], 4096
        $region40: #{tpu_custom_call.1} parent=31 // pred_fallthru
          _
        // Predicated region
        $region41: #{tpu_custom_call.1} parent=31 // pred_check
          %p199 = pneg %p84
        $region42: #{tpu_custom_call.1} parent=31 // pred_check_branch
          %201 = sbr.rel (%p199) target = $region44
        $region43: #{tpu_custom_call.1} parent=31 // pred_region
          %203 = dma.done [#allocation6], 64
        $region44: #{tpu_custom_call.1} parent=31 // pred_fallthru
          _
        %s204 = sand.u32 %s29, 1
        %s205 = scalar_lea.sflag [#allocation3], %s204
        %s206 = sand.u32 %s29, 1
        %s207 = smul.addr %s206, 64
        %s208 = scalar_lea.vmem [#allocation2], %s207
        %p209 = pneg %p42
        %p210 = pneg %p39
        %p211 = pneg %p63
        %p212 = pneg %p60
        %p213 = pneg %p84
        %p214 = pneg %p81
        %p215 = pneg %p110
        %p216 = pneg %p107
        %s217 = sand.u32 %s97, 1
        %s218 = scalar_lea.sflag [#allocation4], %s217
        %s219 = sand.u32 %s97, 1
        %s220 = smul.addr %s219, 256
        %s221 = scalar_lea.vmem [#allocation8], %s220
        %s222 = smul.u32 8, %s21
        %s223 = smul.u32 8, %s21
        %v224 = vld [vmem:[%s188] sm:$0xff]
        %v225 = vld [vmem:[%s188 + $0x8] sm:$0xff]
        %v226 = vld [vmem:[%s188 + $0x10] sm:$0xff]
        %v227 = vld [vmem:[%s188 + $0x18] sm:$0xff]
        %v228 = vld [vmem:[%s188 + $0x20] sm:$0xff]
        %v229 = vld [vmem:[%s188 + $0x28] sm:$0xff]
        %v230 = vld [vmem:[%s188 + $0x30] sm:$0xff]
        %v231 = vld [vmem:[%s188 + $0x38] sm:$0xff]
        %v232 = vpack.c.bf16 %v225, %v224
        %v233 = vpack.c.bf16 %v227, %v226
        %v234 = vpack.c.bf16 %v229, %v228
        %v235 = vpack.c.bf16 %v231, %v230
        %v236 = vld [vmem:[#allocation5] sm:$0xff]
        %v237 = vld [vmem:[#allocation5 + $0x8] sm:$0xff]
        %v238 = vld [vmem:[#allocation5 + $0x10] sm:$0xff]
        %v239 = vld [vmem:[#allocation5 + $0x18] sm:$0xff]
        %v240 = vld [vmem:[#allocation5 + $0x20] sm:$0xff]
        %v241 = vld [vmem:[#allocation5 + $0x28] sm:$0xff]
        %v242 = vld [vmem:[#allocation5 + $0x30] sm:$0xff]
        %v243 = vld [vmem:[#allocation5 + $0x38] sm:$0xff]
        %v244 = vld [vmem:[#allocation5 + $0x40] sm:$0xff]
        %v245 = vld [vmem:[#allocation5 + $0x48] sm:$0xff]
        %v246 = vld [vmem:[#allocation5 + $0x50] sm:$0xff]
        %v247 = vld [vmem:[#allocation5 + $0x58] sm:$0xff]
        %v248 = vld [vmem:[#allocation5 + $0x60] sm:$0xff]
        %v249 = vld [vmem:[#allocation5 + $0x68] sm:$0xff]
        %v250 = vld [vmem:[#allocation5 + $0x70] sm:$0xff]
        %v251 = vld [vmem:[#allocation5 + $0x78] sm:$0xff]
        %v252 = vld [vmem:[#allocation5 + $0x80] sm:$0xff]
        %v253 = vld [vmem:[#allocation5 + $0x88] sm:$0xff]
        %v254 = vld [vmem:[#allocation5 + $0x90] sm:$0xff]
        %v255 = vld [vmem:[#allocation5 + $0x98] sm:$0xff]
        %v256 = vld [vmem:[#allocation5 + $0xa0] sm:$0xff]
        %v257 = vld [vmem:[#allocation5 + $0xa8] sm:$0xff]
        %v258 = vld [vmem:[#allocation5 + $0xb0] sm:$0xff]
        %v259 = vld [vmem:[#allocation5 + $0xb8] sm:$0xff]
        %v260 = vld [vmem:[#allocation5 + $0xc0] sm:$0xff]
        %v261 = vld [vmem:[#allocation5 + $0xc8] sm:$0xff]
        %v262 = vld [vmem:[#allocation5 + $0xd0] sm:$0xff]
        %v263 = vld [vmem:[#allocation5 + $0xd8] sm:$0xff]
        %v264 = vld [vmem:[#allocation5 + $0xe0] sm:$0xff]
        %v265 = vld [vmem:[#allocation5 + $0xe8] sm:$0xff]
        %v266 = vld [vmem:[#allocation5 + $0xf0] sm:$0xff]
        %v267 = vld [vmem:[#allocation5 + $0xf8] sm:$0xff]
        %v268 = vld [vmem:[#allocation7] sm:$0xf]
        %v270 = vperm.slane %v268, 0
        %v271 = vperm.slane %v268, 1
        %v272 = vperm.slane %v268, 2
        %v273 = vperm.slane %v268, 3
        %v310 = vunpack.c.l.b16 %v236
        %v311 = vunpack.c.h.b16 %v236
        %v312 = vunpack.c.l.b16 %v237
        %v313 = vunpack.c.h.b16 %v237
        %v314 = vunpack.c.l.b16 %v238
        %v315 = vunpack.c.h.b16 %v238
        %v316 = vunpack.c.l.b16 %v239
        %v317 = vunpack.c.h.b16 %v239
        %v318 = vunpack.c.l.b16 %v240
        %v319 = vunpack.c.h.b16 %v240
        %v320 = vunpack.c.l.b16 %v241
        %v321 = vunpack.c.h.b16 %v241
        %v322 = vunpack.c.l.b16 %v242
        %v323 = vunpack.c.h.b16 %v242
        %v324 = vunpack.c.l.b16 %v243
        %v325 = vunpack.c.h.b16 %v243
        %v326 = vunpack.c.l.b16 %v244
        %v327 = vunpack.c.h.b16 %v244
        %v328 = vunpack.c.l.b16 %v245
        %v329 = vunpack.c.h.b16 %v245
        %v330 = vunpack.c.l.b16 %v246
        %v331 = vunpack.c.h.b16 %v246
        %v332 = vunpack.c.l.b16 %v247
        %v333 = vunpack.c.h.b16 %v247
        %v334 = vunpack.c.l.b16 %v248
        %v335 = vunpack.c.h.b16 %v248
        %v336 = vunpack.c.l.b16 %v249
        %v337 = vunpack.c.h.b16 %v249
        %v338 = vunpack.c.l.b16 %v250
        %v339 = vunpack.c.h.b16 %v250
        %v340 = vunpack.c.l.b16 %v251
        %v341 = vunpack.c.h.b16 %v251
        %v342 = vunpack.c.l.b16 %v252
        %v343 = vunpack.c.h.b16 %v252
        %v344 = vunpack.c.l.b16 %v253
        %v345 = vunpack.c.h.b16 %v253
        %v346 = vunpack.c.l.b16 %v254
        %v347 = vunpack.c.h.b16 %v254
        %v348 = vunpack.c.l.b16 %v255
        %v349 = vunpack.c.h.b16 %v255
        %v350 = vunpack.c.l.b16 %v256
        %v351 = vunpack.c.h.b16 %v256
        %v352 = vunpack.c.l.b16 %v257
        %v353 = vunpack.c.h.b16 %v257
        %v354 = vunpack.c.l.b16 %v258
        %v355 = vunpack.c.h.b16 %v258
        %v356 = vunpack.c.l.b16 %v259
        %v357 = vunpack.c.h.b16 %v259
        %v358 = vunpack.c.l.b16 %v260
        %v359 = vunpack.c.h.b16 %v260
        %v360 = vunpack.c.l.b16 %v261
        %v361 = vunpack.c.h.b16 %v261
        %v362 = vunpack.c.l.b16 %v262
        %v363 = vunpack.c.h.b16 %v262
        %v364 = vunpack.c.l.b16 %v263
        %v365 = vunpack.c.h.b16 %v263
        %v366 = vunpack.c.l.b16 %v264
        %v367 = vunpack.c.h.b16 %v264
        %v368 = vunpack.c.l.b16 %v265
        %v369 = vunpack.c.h.b16 %v265
        %v370 = vunpack.c.l.b16 %v266
        %v371 = vunpack.c.h.b16 %v266
        %v372 = vunpack.c.l.b16 %v267
        %v373 = vunpack.c.h.b16 %v267
        %v374 = vpack.c.b16 %v314, %v310
        %v375 = vpack.c.b16 %v315, %v311
        %v376 = vpack.c.b16 %v316, %v312
        %v377 = vpack.c.b16 %v317, %v313
        %v378 = vpack.c.b16 %v322, %v318
        %v379 = vpack.c.b16 %v323, %v319
        %v380 = vpack.c.b16 %v324, %v320
        %v381 = vpack.c.b16 %v325, %v321
        %v382 = vpack.c.b16 %v330, %v326
        %v383 = vpack.c.b16 %v331, %v327
        %v384 = vpack.c.b16 %v332, %v328
        %v385 = vpack.c.b16 %v333, %v329
        %v386 = vpack.c.b16 %v338, %v334
        %v387 = vpack.c.b16 %v339, %v335
        %v388 = vpack.c.b16 %v340, %v336
        %v389 = vpack.c.b16 %v341, %v337
        %v390 = vpack.c.b16 %v346, %v342
        %v391 = vpack.c.b16 %v347, %v343
        %v392 = vpack.c.b16 %v348, %v344
        %v393 = vpack.c.b16 %v349, %v345
        %v394 = vpack.c.b16 %v354, %v350
        %v395 = vpack.c.b16 %v355, %v351
        %v396 = vpack.c.b16 %v356, %v352
        %v397 = vpack.c.b16 %v357, %v353
        %v398 = vpack.c.b16 %v362, %v358
        %v399 = vpack.c.b16 %v363, %v359
        %v400 = vpack.c.b16 %v364, %v360
        %v401 = vpack.c.b16 %v365, %v361
        %v402 = vpack.c.b16 %v370, %v366
        %v403 = vpack.c.b16 %v371, %v367
        %v404 = vpack.c.b16 %v372, %v368
        %v405 = vpack.c.b16 %v373, %v369
        %438 = vmatpush.bf16.msra.mxu0 %v402
        %439 = vmatpush.bf16.msra.mxu0 %v398
        %440 = vmatpush.bf16.msra.mxu0 %v394
        %441 = vmatpush.bf16.msra.mxu0 %v390
        %442 = vmatpush.bf16.msra.mxu0 %v386
        %443 = vmatpush.bf16.msra.mxu0 %v382
        %444 = vmatpush.bf16.msra.mxu0 %v378
        %445 = vmatpush.bf16.msra.mxu0 %v374
        %446 = vmatmul.bf16.gmra.mxu0 %v232
        %v447 = vpop.f32.mrf.mxu0
        %v448 = vadd.f32 %v270, %v447
        %v449 = vpop.f32.mrf.mxu0
        %v450 = vadd.f32 %v270, %v449
        %451 = vmatmul.bf16.gmra.mxu0 %v233
        %v452 = vpop.f32.mrf.mxu0
        %v453 = vadd.f32 %v270, %v452
        %v454 = vpop.f32.mrf.mxu0
        %v455 = vadd.f32 %v270, %v454
        %456 = vmatmul.bf16.gmra.mxu0 %v234
        %v457 = vpop.f32.mrf.mxu0
        %v458 = vadd.f32 %v270, %v457
        %v459 = vpop.f32.mrf.mxu0
        %v460 = vadd.f32 %v270, %v459
        %461 = vmatmul.bf16.gmra.mxu0 %v235
        %v462 = vpop.f32.mrf.mxu0
        %v463 = vadd.f32 %v270, %v462
        %v464 = vpop.f32.mrf.mxu0
        %v465 = vadd.f32 %v270, %v464
        %466 = vdwg.mxu0
        %467 = vmatpush.bf16.msra.mxu0 %v403
        %468 = vmatpush.bf16.msra.mxu0 %v399
        %469 = vmatpush.bf16.msra.mxu0 %v395
        %470 = vmatpush.bf16.msra.mxu0 %v391
        %471 = vmatpush.bf16.msra.mxu0 %v387
        %472 = vmatpush.bf16.msra.mxu0 %v383
        %473 = vmatpush.bf16.msra.mxu0 %v379
        %474 = vmatpush.bf16.msra.mxu0 %v375
        %475 = vmatmul.bf16.gmra.mxu0 %v232
        %v476 = vpop.f32.mrf.mxu0
        %v477 = vadd.f32 %v271, %v476
        %v478 = vpop.f32.mrf.mxu0
        %v479 = vadd.f32 %v271, %v478
        %480 = vmatmul.bf16.gmra.mxu0 %v233
        %v481 = vpop.f32.mrf.mxu0
        %v482 = vadd.f32 %v271, %v481
        %v483 = vpop.f32.mrf.mxu0
        %v484 = vadd.f32 %v271, %v483
        %485 = vmatmul.bf16.gmra.mxu0 %v234
        %v486 = vpop.f32.mrf.mxu0
        %v487 = vadd.f32 %v271, %v486
        %v488 = vpop.f32.mrf.mxu0
        %v489 = vadd.f32 %v271, %v488
        %490 = vmatmul.bf16.gmra.mxu0 %v235
        %v491 = vpop.f32.mrf.mxu0
        %v492 = vadd.f32 %v271, %v491
        %v493 = vpop.f32.mrf.mxu0
        %v494 = vadd.f32 %v271, %v493
        %495 = vdwg.mxu0
        %496 = vmatpush.bf16.msra.mxu0 %v404
        %497 = vmatpush.bf16.msra.mxu0 %v400
        %498 = vmatpush.bf16.msra.mxu0 %v396
        %499 = vmatpush.bf16.msra.mxu0 %v392
        %500 = vmatpush.bf16.msra.mxu0 %v388
        %501 = vmatpush.bf16.msra.mxu0 %v384
        %502 = vmatpush.bf16.msra.mxu0 %v380
        %503 = vmatpush.bf16.msra.mxu0 %v376
        %504 = vmatmul.bf16.gmra.mxu0 %v232
        %v505 = vpop.f32.mrf.mxu0
        %v506 = vadd.f32 %v272, %v505
        %v507 = vpop.f32.mrf.mxu0
        %v508 = vadd.f32 %v272, %v507
        %509 = vmatmul.bf16.gmra.mxu0 %v233
        %v510 = vpop.f32.mrf.mxu0
        %v511 = vadd.f32 %v272, %v510
        %v512 = vpop.f32.mrf.mxu0
        %v513 = vadd.f32 %v272, %v512
        %514 = vmatmul.bf16.gmra.mxu0 %v234
        %v515 = vpop.f32.mrf.mxu0
        %v516 = vadd.f32 %v272, %v515
        %v517 = vpop.f32.mrf.mxu0
        %v518 = vadd.f32 %v272, %v517
        %519 = vmatmul.bf16.gmra.mxu0 %v235
        %v520 = vpop.f32.mrf.mxu0
        %v521 = vadd.f32 %v272, %v520
        %v522 = vpop.f32.mrf.mxu0
        %v523 = vadd.f32 %v272, %v522
        %524 = vdwg.mxu0
        %525 = vmatpush.bf16.msra.mxu0 %v405
        %526 = vmatpush.bf16.msra.mxu0 %v401
        %527 = vmatpush.bf16.msra.mxu0 %v397
        %528 = vmatpush.bf16.msra.mxu0 %v393
        %529 = vmatpush.bf16.msra.mxu0 %v389
        %530 = vmatpush.bf16.msra.mxu0 %v385
        %531 = vmatpush.bf16.msra.mxu0 %v381
        %532 = vmatpush.bf16.msra.mxu0 %v377
        %533 = vmatmul.bf16.gmra.mxu0 %v232
        %v534 = vpop.f32.mrf.mxu0
        %v535 = vadd.f32 %v273, %v534
        %v536 = vpop.f32.mrf.mxu0
        %v537 = vadd.f32 %v273, %v536
        %538 = vmatmul.bf16.gmra.mxu0 %v233
        %v539 = vpop.f32.mrf.mxu0
        %v540 = vadd.f32 %v273, %v539
        %v541 = vpop.f32.mrf.mxu0
        %v542 = vadd.f32 %v273, %v541
        %543 = vmatmul.bf16.gmra.mxu0 %v234
        %v544 = vpop.f32.mrf.mxu0
        %v545 = vadd.f32 %v273, %v544
        %v546 = vpop.f32.mrf.mxu0
        %v547 = vadd.f32 %v273, %v546
        %548 = vmatmul.bf16.gmra.mxu0 %v235
        %v549 = vpop.f32.mrf.mxu0
        %v550 = vadd.f32 %v273, %v549
        %v551 = vpop.f32.mrf.mxu0
        %v552 = vadd.f32 %v273, %v551
        %553 = vdwg.mxu0
        %v554 = vadd.f32 %v448, %v477
        %v555 = vadd.f32 %v554, %v506
        %v556 = vadd.f32 %v555, %v535
        %557 = vadd.xlane.f32.xlu0 %v556
        %v558 = vpop.xlane.xlu0 %557
        %v559 = vadd.f32 %v450, %v479
        %v560 = vadd.f32 %v559, %v508
        %v561 = vadd.f32 %v560, %v537
        %562 = vadd.xlane.f32.xlu0 %v561
        %v563 = vpop.xlane.xlu0 %562
        %v564 = vadd.f32 %v453, %v482
        %v565 = vadd.f32 %v564, %v511
        %v566 = vadd.f32 %v565, %v540
        %567 = vadd.xlane.f32.xlu0 %v566
        %v568 = vpop.xlane.xlu0 %567
        %v569 = vadd.f32 %v455, %v484
        %v570 = vadd.f32 %v569, %v513
        %v571 = vadd.f32 %v570, %v542
        %572 = vadd.xlane.f32.xlu0 %v571
        %v573 = vpop.xlane.xlu0 %572
        %v574 = vadd.f32 %v458, %v487
        %v575 = vadd.f32 %v574, %v516
        %v576 = vadd.f32 %v575, %v545
        %577 = vadd.xlane.f32.xlu0 %v576
        %v578 = vpop.xlane.xlu0 %577
        %v579 = vadd.f32 %v460, %v489
        %v580 = vadd.f32 %v579, %v518
        %v581 = vadd.f32 %v580, %v547
        %582 = vadd.xlane.f32.xlu0 %v581
        %v583 = vpop.xlane.xlu0 %582
        %v584 = vadd.f32 %v463, %v492
        %v585 = vadd.f32 %v584, %v521
        %v586 = vadd.f32 %v585, %v550
        %587 = vadd.xlane.f32.xlu0 %v586
        %v588 = vpop.xlane.xlu0 %587
        %v589 = vadd.f32 %v465, %v494
        %v590 = vadd.f32 %v589, %v523
        %v591 = vadd.f32 %v590, %v552
        %592 = vadd.xlane.f32.xlu0 %v591
        %v593 = vpop.xlane.xlu0 %592
        %v594 = vrcp.pop 512.0
        %v595 = vmul.f32 512.0, %v594
        %v596 = vsub.f32 1.0, %v595
        %v597 = vmul.f32 %v594, %v596
        %v598 = vadd.f32 %v594, %v597
        %vm599 = vweird.f32 %v594
        %v600 = vsel %vm599, %v594, %v598
        %v601 = vmul.f32 %v558, %v600
        %v602 = vmul.f32 %v563, %v600
        %v603 = vmul.f32 %v568, %v600
        %v604 = vmul.f32 %v573, %v600
        %v605 = vmul.f32 %v578, %v600
        %v606 = vmul.f32 %v583, %v600
        %v607 = vmul.f32 %v588, %v600
        %v608 = vmul.f32 %v593, %v600
        %v609 = vsub.f32 %v448, %v601
        %v610 = vsub.f32 %v477, %v601
        %v611 = vsub.f32 %v506, %v601
        %v612 = vsub.f32 %v535, %v601
        %v613 = vsub.f32 %v450, %v602
        %v614 = vsub.f32 %v479, %v602
        %v615 = vsub.f32 %v508, %v602
        %v616 = vsub.f32 %v537, %v602
        %v617 = vsub.f32 %v453, %v603
        %v618 = vsub.f32 %v482, %v603
        %v619 = vsub.f32 %v511, %v603
        %v620 = vsub.f32 %v540, %v603
        %v621 = vsub.f32 %v455, %v604
        %v622 = vsub.f32 %v484, %v604
        %v623 = vsub.f32 %v513, %v604
        %v624 = vsub.f32 %v542, %v604
        %v625 = vsub.f32 %v458, %v605
        %v626 = vsub.f32 %v487, %v605
        %v627 = vsub.f32 %v516, %v605
        %v628 = vsub.f32 %v545, %v605
        %v629 = vsub.f32 %v460, %v606
        %v630 = vsub.f32 %v489, %v606
        %v631 = vsub.f32 %v518, %v606
        %v632 = vsub.f32 %v547, %v606
        %v633 = vsub.f32 %v463, %v607
        %v634 = vsub.f32 %v492, %v607
        %v635 = vsub.f32 %v521, %v607
        %v636 = vsub.f32 %v550, %v607
        %v637 = vsub.f32 %v465, %v608
        %v638 = vsub.f32 %v494, %v608
        %v639 = vsub.f32 %v523, %v608
        %v640 = vsub.f32 %v552, %v608
        %v641 = vmul.f32 %v609, %v609
        %v642 = vmul.f32 %v610, %v610
        %v643 = vmul.f32 %v611, %v611
        %v644 = vmul.f32 %v612, %v612
        %v645 = vmul.f32 %v613, %v613
        %v646 = vmul.f32 %v614, %v614
        %v647 = vmul.f32 %v615, %v615
        %v648 = vmul.f32 %v616, %v616
        %v649 = vmul.f32 %v617, %v617
        %v650 = vmul.f32 %v618, %v618
        %v651 = vmul.f32 %v619, %v619
        %v652 = vmul.f32 %v620, %v620
        %v653 = vmul.f32 %v621, %v621
        %v654 = vmul.f32 %v622, %v622
        %v655 = vmul.f32 %v623, %v623
        %v656 = vmul.f32 %v624, %v624
        %v657 = vmul.f32 %v625, %v625
        %v658 = vmul.f32 %v626, %v626
        %v659 = vmul.f32 %v627, %v627
        %v660 = vmul.f32 %v628, %v628
        %v661 = vmul.f32 %v629, %v629
        %v662 = vmul.f32 %v630, %v630
        %v663 = vmul.f32 %v631, %v631
        %v664 = vmul.f32 %v632, %v632
        %v665 = vmul.f32 %v633, %v633
        %v666 = vmul.f32 %v634, %v634
        %v667 = vmul.f32 %v635, %v635
        %v668 = vmul.f32 %v636, %v636
        %v669 = vmul.f32 %v637, %v637
        %v670 = vmul.f32 %v638, %v638
        %v671 = vmul.f32 %v639, %v639
        %v672 = vmul.f32 %v640, %v640
        %v673 = vadd.f32 %v641, %v642
        %v674 = vadd.f32 %v673, %v643
        %v675 = vadd.f32 %v674, %v644
        %676 = vadd.xlane.f32.xlu0 %v675
        %v677 = vpop.xlane.xlu0 %676
        %v678 = vadd.f32 %v645, %v646
        %v679 = vadd.f32 %v678, %v647
        %v680 = vadd.f32 %v679, %v648
        %681 = vadd.xlane.f32.xlu0 %v680
        %v682 = vpop.xlane.xlu0 %681
        %v683 = vadd.f32 %v649, %v650
        %v684 = vadd.f32 %v683, %v651
        %v685 = vadd.f32 %v684, %v652
        %686 = vadd.xlane.f32.xlu0 %v685
        %v687 = vpop.xlane.xlu0 %686
        %v688 = vadd.f32 %v653, %v654
        %v689 = vadd.f32 %v688, %v655
        %v690 = vadd.f32 %v689, %v656
        %691 = vadd.xlane.f32.xlu0 %v690
        %v692 = vpop.xlane.xlu0 %691
        %v693 = vadd.f32 %v657, %v658
        %v694 = vadd.f32 %v693, %v659
        %v695 = vadd.f32 %v694, %v660
        %696 = vadd.xlane.f32.xlu0 %v695
        %v697 = vpop.xlane.xlu0 %696
        %v698 = vadd.f32 %v661, %v662
        %v699 = vadd.f32 %v698, %v663
        %v700 = vadd.f32 %v699, %v664
        %701 = vadd.xlane.f32.xlu0 %v700
        %v702 = vpop.xlane.xlu0 %701
        %v703 = vadd.f32 %v665, %v666
        %v704 = vadd.f32 %v703, %v667
        %v705 = vadd.f32 %v704, %v668
        %706 = vadd.xlane.f32.xlu0 %v705
        %v707 = vpop.xlane.xlu0 %706
        %v708 = vadd.f32 %v669, %v670
        %v709 = vadd.f32 %v708, %v671
        %v710 = vadd.f32 %v709, %v672
        %711 = vadd.xlane.f32.xlu0 %v710
        %v712 = vpop.xlane.xlu0 %711
        %v713 = vmul.f32 %v677, %v600
        %v714 = vmul.f32 %v682, %v600
        %v715 = vmul.f32 %v687, %v600
        %v716 = vmul.f32 %v692, %v600
        %v717 = vmul.f32 %v697, %v600
        %v718 = vmul.f32 %v702, %v600
        %v719 = vmul.f32 %v707, %v600
        %v720 = vmul.f32 %v712, %v600
        %v721 = vadd.f32 %v713, 1e-05
        %v722 = vadd.f32 %v714, 1e-05
        %v723 = vadd.f32 %v715, 1e-05
        %v724 = vadd.f32 %v716, 1e-05
        %v725 = vadd.f32 %v717, 1e-05
        %v726 = vadd.f32 %v718, 1e-05
        %v727 = vadd.f32 %v719, 1e-05
        %v728 = vadd.f32 %v720, 1e-05
        %v729 = vrsqrt.pop %v721
        %v730 = vmul.f32 %v729, %v721
        %v731 = vmul.f32 %v730, %v729
        %v732 = vmul.f32 0.5, %v731
        %v733 = vsub.f32 1.5, %v732
        %v734 = vmul.f32 %v729, %v733
        %vm735 = vweird.f32 %v721
        %vm736 = vweird.f32 %v729
        %vm737 = vmor %vm735, %vm736
        %v738 = vsel %vm737, %v729, %v734
        %v739 = vrsqrt.pop %v722
        %v740 = vmul.f32 %v739, %v722
        %v741 = vmul.f32 %v740, %v739
        %v742 = vmul.f32 0.5, %v741
        %v743 = vsub.f32 1.5, %v742
        %v744 = vmul.f32 %v739, %v743
        %vm745 = vweird.f32 %v722
        %vm746 = vweird.f32 %v739
        %vm747 = vmor %vm745, %vm746
        %v748 = vsel %vm747, %v739, %v744
        %v749 = vrsqrt.pop %v723
        %v750 = vmul.f32 %v749, %v723
        %v751 = vmul.f32 %v750, %v749
        %v752 = vmul.f32 0.5, %v751
        %v753 = vsub.f32 1.5, %v752
        %v754 = vmul.f32 %v749, %v753
        %vm755 = vweird.f32 %v723
        %vm756 = vweird.f32 %v749
        %vm757 = vmor %vm755, %vm756
        %v758 = vsel %vm757, %v749, %v754
        %v759 = vrsqrt.pop %v724
        %v760 = vmul.f32 %v759, %v724
        %v761 = vmul.f32 %v760, %v759
        %v762 = vmul.f32 0.5, %v761
        %v763 = vsub.f32 1.5, %v762
        %v764 = vmul.f32 %v759, %v763
        %vm765 = vweird.f32 %v724
        %vm766 = vweird.f32 %v759
        %vm767 = vmor %vm765, %vm766
        %v768 = vsel %vm767, %v759, %v764
        %v769 = vrsqrt.pop %v725
        %v770 = vmul.f32 %v769, %v725
        %v771 = vmul.f32 %v770, %v769
        %v772 = vmul.f32 0.5, %v771
        %v773 = vsub.f32 1.5, %v772
        %v774 = vmul.f32 %v769, %v773
        %vm775 = vweird.f32 %v725
        %vm776 = vweird.f32 %v769
        %vm777 = vmor %vm775, %vm776
        %v778 = vsel %vm777, %v769, %v774
        %v779 = vrsqrt.pop %v726
        %v780 = vmul.f32 %v779, %v726
        %v781 = vmul.f32 %v780, %v779
        %v782 = vmul.f32 0.5, %v781
        %v783 = vsub.f32 1.5, %v782
        %v784 = vmul.f32 %v779, %v783
        %vm785 = vweird.f32 %v726
        %vm786 = vweird.f32 %v779
        %vm787 = vmor %vm785, %vm786
        %v788 = vsel %vm787, %v779, %v784
        %v789 = vrsqrt.pop %v727
        %v790 = vmul.f32 %v789, %v727
        %v791 = vmul.f32 %v790, %v789
        %v792 = vmul.f32 0.5, %v791
        %v793 = vsub.f32 1.5, %v792
        %v794 = vmul.f32 %v789, %v793
        %vm795 = vweird.f32 %v727
        %vm796 = vweird.f32 %v789
        %vm797 = vmor %vm795, %vm796
        %v798 = vsel %vm797, %v789, %v794
        %v799 = vrsqrt.pop %v728
        %v800 = vmul.f32 %v799, %v728
        %v801 = vmul.f32 %v800, %v799
        %v802 = vmul.f32 0.5, %v801
        %v803 = vsub.f32 1.5, %v802
        %v804 = vmul.f32 %v799, %v803
        %vm805 = vweird.f32 %v728
        %vm806 = vweird.f32 %v799
        %vm807 = vmor %vm805, %vm806
        %v808 = vsel %vm807, %v799, %v804
        %v809 = vmul.f32 %v609, %v738
        %v810 = vmul.f32 %v610, %v738
        %v811 = vmul.f32 %v611, %v738
        %v812 = vmul.f32 %v612, %v738
        %v813 = vmul.f32 %v613, %v748
        %v814 = vmul.f32 %v614, %v748
        %v815 = vmul.f32 %v615, %v748
        %v816 = vmul.f32 %v616, %v748
        %v817 = vmul.f32 %v617, %v758
        %v818 = vmul.f32 %v618, %v758
        %v819 = vmul.f32 %v619, %v758
        %v820 = vmul.f32 %v620, %v758
        %v821 = vmul.f32 %v621, %v768
        %v822 = vmul.f32 %v622, %v768
        %v823 = vmul.f32 %v623, %v768
        %v824 = vmul.f32 %v624, %v768
        %v825 = vmul.f32 %v625, %v778
        %v826 = vmul.f32 %v626, %v778
        %v827 = vmul.f32 %v627, %v778
        %v828 = vmul.f32 %v628, %v778
        %v829 = vmul.f32 %v629, %v788
        %v830 = vmul.f32 %v630, %v788
        %v831 = vmul.f32 %v631, %v788
        %v832 = vmul.f32 %v632, %v788
        %v833 = vmul.f32 %v633, %v798
        %v834 = vmul.f32 %v634, %v798
        %v835 = vmul.f32 %v635, %v798
        %v836 = vmul.f32 %v636, %v798
        %v837 = vmul.f32 %v637, %v808
        %v838 = vmul.f32 %v638, %v808
        %v839 = vmul.f32 %v639, %v808
        %v840 = vmul.f32 %v640, %v808
        %841 = vst [vmem:[%s221] sm:$0xff] %v809
        %842 = vst [vmem:[%s221 + $0x8] sm:$0xff] %v810
        %843 = vst [vmem:[%s221 + $0x10] sm:$0xff] %v811
        %844 = vst [vmem:[%s221 + $0x18] sm:$0xff] %v812
        %845 = vst [vmem:[%s221 + $0x20] sm:$0xff] %v813
        %846 = vst [vmem:[%s221 + $0x28] sm:$0xff] %v814
        %847 = vst [vmem:[%s221 + $0x30] sm:$0xff] %v815
        %848 = vst [vmem:[%s221 + $0x38] sm:$0xff] %v816
        %849 = vst [vmem:[%s221 + $0x40] sm:$0xff] %v817
        %850 = vst [vmem:[%s221 + $0x48] sm:$0xff] %v818
        %851 = vst [vmem:[%s221 + $0x50] sm:$0xff] %v819
        %852 = vst [vmem:[%s221 + $0x58] sm:$0xff] %v820
        %853 = vst [vmem:[%s221 + $0x60] sm:$0xff] %v821
        %854 = vst [vmem:[%s221 + $0x68] sm:$0xff] %v822
        %855 = vst [vmem:[%s221 + $0x70] sm:$0xff] %v823
        %856 = vst [vmem:[%s221 + $0x78] sm:$0xff] %v824
        %857 = vst [vmem:[%s221 + $0x80] sm:$0xff] %v825
        %858 = vst [vmem:[%s221 + $0x88] sm:$0xff] %v826
        %859 = vst [vmem:[%s221 + $0x90] sm:$0xff] %v827
        %860 = vst [vmem:[%s221 + $0x98] sm:$0xff] %v828
        %861 = vst [vmem:[%s221 + $0xa0] sm:$0xff] %v829
        %862 = vst [vmem:[%s221 + $0xa8] sm:$0xff] %v830
        %863 = vst [vmem:[%s221 + $0xb0] sm:$0xff] %v831
        %864 = vst [vmem:[%s221 + $0xb8] sm:$0xff] %v832
        %865 = vst [vmem:[%s221 + $0xc0] sm:$0xff] %v833
        %866 = vst [vmem:[%s221 + $0xc8] sm:$0xff] %v834
        %867 = vst [vmem:[%s221 + $0xd0] sm:$0xff] %v835
        %868 = vst [vmem:[%s221 + $0xd8] sm:$0xff] %v836
        %869 = vst [vmem:[%s221 + $0xe0] sm:$0xff] %v837
        %870 = vst [vmem:[%s221 + $0xe8] sm:$0xff] %v838
        %871 = vst [vmem:[%s221 + $0xf0] sm:$0xff] %v839
        %872 = vst [vmem:[%s221 + $0xf8] sm:$0xff] %v840
        %s873 = sand.u32 %s97, 1
        %s874 = scalar_lea.sflag [#allocation4], %s873
        %s875 = sand.u32 %s97, 1
        %s876 = smul.addr %s875, 256
        %s877 = scalar_lea.vmem [#allocation8], %s876
        // Predicated region
        $region45: #{tpu_custom_call.1} parent=31 // pred_check
          %p878 = pneg %p107
        $region46: #{tpu_custom_call.1} parent=31 // pred_check_branch
          %880 = sbr.rel (%p878) target = $region48
        $region47: #{tpu_custom_call.1} parent=31 // pred_region
          %s881 = smul.u32 8, %s21
          %883 = vsyncadd %s874, 0
          %s884 = smul.addr %s881, 4
          %s885 = smul.addr %s884, 8
          %s886 = scalar_lea.hbm %s3, %s885
          %s887 = sshll.u32 %s877, 4
          %s888 = int_to_ptr.vmem [resolvable:$true] %s887
          %s889 = sshll.u32 %s886, 4
          %s890 = int_to_ptr.hbm [resolvable:$true] %s889
          %895 = dma.vmem_to_hbm [thread:$0]  %s888, 4096, %s890, %s874, 512, 512, 32
        $region48: #{tpu_custom_call.1} parent=31 // pred_fallthru
          _
      $region32: #{tpu_custom_call.1} parent=5 // pred_fallthru
        _
      %p896 = scmp.le.s32.totalorder 2, %s16
      // Predicated region
      $region49: #{tpu_custom_call.1} parent=5 // pred_check
        %p897 = pneg %p896
      $region50: #{tpu_custom_call.1} parent=5 // pred_check_branch
        %899 = sbr.rel (%p897) target = $region52
      $region51: #{tpu_custom_call.1} parent=5 // pred_region
        %s900 = ssub.s32 %s16, 2
        // Predicated region
        $region53: #{tpu_custom_call.1} parent=51 // pred_check
          %p901 = pneg %p113
        $region54: #{tpu_custom_call.1} parent=51 // pred_check_branch
          %903 = sbr.rel (%p901) target = $region56
        $region55: #{tpu_custom_call.1} parent=51 // pred_region
          %s904 = sand.u32 %s98, 1
          %s905 = scalar_lea.sflag [#allocation4], %s904
          %s906 = sand.u32 %s98, 1
          %s907 = smul.addr %s906, 256
          %s908 = scalar_lea.vmem [#allocation8], %s907
          %910 = dma.done %s905, 4096
        $region56: #{tpu_custom_call.1} parent=51 // pred_fallthru
          _
      $region52: #{tpu_custom_call.1} parent=5 // pred_fallthru
        _
    $region6: #{tpu_custom_call.1} parent=1 // loop_footer
      %s20 = sadd.s32 1, %s16
    $region7: #{tpu_custom_call.1} parent=1 // loop_footer_branch
      %15 = sbr.rel target = $region3
    $region8: #{tpu_custom_call.1} parent=1 // loop_exit
      _
    %911 = vsyncpa [#allocation3], 1
    %s912 = scalar_lea.sflag [#allocation3], 1
    %913 = vsyncpa %s912, 1
    %914 = vsyncpa [#allocation6], 1
    %915 = vsyncpa [#allocation4], 1
    %s916 = scalar_lea.sflag [#allocation4], 1
    %917 = vsyncpa %s916, 1

// kernel: tpu_custom_call.1
$region0: #{tpu_custom_call.1}
  #allocation0 [shape = 'u32[]', space=smem, size = 0x4, offset = 0x4, fixed_abs, tag = 'smem constant byte address 0x4 - core index']
  #allocation1 [shape = 'u32[72,128]{1,0:T(1,128)}', space=vmem, size = 0x9000, scoped, tag = 'internal scratch']
  %s0 = inlined_call_operand.hbm [shape: f32[320,128], index: 0, kind: input, shape index: {}]
  %s1 = inlined_call_operand.hbm [shape: bf16[128,512], index: 1, kind: input, shape index: {}]
  %s2 = inlined_call_operand.hbm [shape: f32[1,512], index: 2, kind: input, shape index: {}]
  %s3 = inlined_call_operand.hbm [shape: f32[320,512], index: 3, kind: output, shape index: {}]
  %s4 = sld [smem:[#allocation0]]
  $region57: #{tpu_custom_call.1} parent=0
    _
  %s6 = ssub.s32 1, %s4
  %s7 = scalar_select 0, %s6, %s4
  $region1: #{tpu_custom_call.1} parent=0
    #allocation2 [shape = 'u8[65536]{0}', space=vmem, size = 0x10000, scoped, tag = 'input window, operand 0']
    #allocation3 [shape = 's32[2]{0}', space=sflag, size = 0x8, scoped, tag = 'scoped memory for tpu_custom_call.1']
    #allocation4 [shape = 's32[2]{0}', space=sflag, size = 0x8, scoped, tag = 'scoped memory for tpu_custom_call.1']
    #allocation5 [shape = 'u8[131072]{0}', space=vmem, size = 0x20000, scoped, tag = 'input window, operand 1, single buffered']
    #allocation6 [shape = 's32[1]{0}', space=sflag, size = 0x4, scoped, tag = 'scoped memory for tpu_custom_call.1']
    #allocation7 [shape = 'u8[2048]{0}', space=vmem, size = 0x800, scoped, tag = 'input window, operand 2, single buffered']
    #allocation8 [shape = 'u8[262144]{0}', space=vmem, size = 0x40000, scoped, tag = 'output window, operand 0']
    %8 = vsyncpa [#allocation3], 0
    %s9 = scalar_lea.sflag [#allocation3], 1
    %10 = vsyncpa %s9, 0
    %11 = vsyncpa [#allocation6], 0
    %12 = vsyncpa [#allocation4], 0
    %s13 = scalar_lea.sflag [#allocation4], 1
    %14 = vsyncpa %s13, 0
    loop: start=0, step=1, limit=7
    $region2: #{tpu_custom_call.1} parent=1 // loop_pre_header
      _
    $region3: #{tpu_custom_call.1} parent=1 // loop_header
      %s16 = sphi 0, %s20
      %p17 = scmp.ge.s32.totalorder %s16, 7
      %s26 = sphi 0, %s28
      %s29 = sphi 0, %s26
      %s30 = sphi 0, %s29
      %s46 = sphi 0, %s30
      %s50 = sphi 0, %s50
      %s52 = sphi 0, %s50
      %s53 = sphi 0, %s52
      %s67 = sphi 0, %s53
      %s71 = sphi 0, %s71
      %s73 = sphi 0, %s71
      %s74 = sphi 0, %s73
      %s88 = sphi 0, %s74
      %s94 = sphi 0, %s96
      %s97 = sphi 0, %s94
      %s98 = sphi 0, %s97
      %s114 = sphi 0, %s98
    $region4: #{tpu_custom_call.1} parent=1 // loop_header_branch
      %19 = sbr.rel (%p17) target = $region8
    $region5: #{tpu_custom_call.1} parent=1 // loop_body
      %s21 = ssub.s32 %s16, 1
      %s22 = ssub.s32 %s16, 2
      %s23 = sadd.s32 %s16, 1
      %s24 = ssub.s32 %s16, %s23
      %p25 = scmp.eq.s32.totalorder %s24, 0
      %s27 = sadd.s32 %s26, 1
      %s28 = scalar_select %p25, %s26, %s27
      %p31 = pneg %p25
      %p32 = scmp.eq.s32.totalorder %s16, 4
      %p33 = por %p31, %p32
      %p34 = scmp.ne.s32.totalorder %s26, %s29
      %p35 = scmp.eq.s32.totalorder %s16, 0
      %p36 = por %p34, %p35
      %p37 = scmp.ne.s32.totalorder %s26, %s29
      %p38 = scmp.eq.s32.totalorder %s21, 4
      %p39 = por %p37, %p38
      %p40 = scmp.ne.s32.totalorder %s29, %s30
      %p41 = scmp.eq.s32.totalorder %s21, 0
      %p42 = por %p40, %p41
      %p43 = scmp.ne.s32.totalorder %s29, %s30
      %p44 = scmp.eq.s32.totalorder %s22, 4
      %p45 = por %p43, %p44
      %p47 = scmp.ne.s32.totalorder %s30, %s46
      %p48 = scmp.eq.s32.totalorder %s22, 0
      %p49 = por %p47, %p48
      %s51 = sadd.s32 %s50, 1
      %p54 = scmp.eq.s32.totalorder %s16, 4
      %p55 = scmp.ne.s32.totalorder %s50, %s52
      %p56 = scmp.eq.s32.totalorder %s16, 0
      %p57 = por %p55, %p56
      %p58 = scmp.ne.s32.totalorder %s50, %s52
      %p59 = scmp.eq.s32.totalorder %s21, 4
      %p60 = por %p58, %p59
      %p61 = scmp.ne.s32.totalorder %s52, %s53
      %p62 = scmp.eq.s32.totalorder %s21, 0
      %p63 = por %p61, %p62
      %p64 = scmp.ne.s32.totalorder %s52, %s53
      %p65 = scmp.eq.s32.totalorder %s22, 4
      %p66 = por %p64, %p65
      %p68 = scmp.ne.s32.totalorder %s53, %s67
      %p69 = scmp.eq.s32.totalorder %s22, 0
      %p70 = por %p68, %p69
      %s72 = sadd.s32 %s71, 1
      %p75 = scmp.eq.s32.totalorder %s16, 4
      %p76 = scmp.ne.s32.totalorder %s71, %s73
      %p77 = scmp.eq.s32.totalorder %s16, 0
      %p78 = por %p76, %p77
      %p79 = scmp.ne.s32.totalorder %s71, %s73
      %p80 = scmp.eq.s32.totalorder %s21, 4
      %p81 = por %p79, %p80
      %p82 = scmp.ne.s32.totalorder %s73, %s74
      %p83 = scmp.eq.s32.totalorder %s21, 0
      %p84 = por %p82, %p83
      %p85 = scmp.ne.s32.totalorder %s73, %s74
      %p86 = scmp.eq.s32.totalorder %s22, 4
      %p87 = por %p85, %p86
      %p89 = scmp.ne.s32.totalorder %s74, %s88
      %p90 = scmp.eq.s32.totalorder %s22, 0
      %p91 = por %p89, %p90
      %s92 = ssub.s32 %s16, %s23
      %p93 = scmp.eq.s32.totalorder %s92, 0
      %s95 = sadd.s32 %s94, 1
      %s96 = scalar_select %p93, %s94, %s95
      %p99 = pneg %p93
      %p100 = scmp.eq.s32.totalorder %s16, 4
      %p101 = por %p99, %p100
      %p102 = scmp.ne.s32.totalorder %s94, %s97
      %p103 = scmp.eq.s32.totalorder %s16, 0
      %p104 = por %p102, %p103
      %p105 = scmp.ne.s32.totalorder %s94, %s97
      %p106 = scmp.eq.s32.totalorder %s21, 4
      %p107 = por %p105, %p106
      %p108 = scmp.ne.s32.totalorder %s97, %s98
      %p109 = scmp.eq.s32.totalorder %s21, 0
      %p110 = por %p108, %p109
      %p111 = scmp.ne.s32.totalorder %s97, %s98
      %p112 = scmp.eq.s32.totalorder %s22, 4
      %p113 = por %p111, %p112
      %p115 = scmp.ne.s32.totalorder %s98, %s114
      %p116 = scmp.eq.s32.totalorder %s22, 0
      %p117 = por %p115, %p116
      %p118 = scmp.le.s32.totalorder 1, %s16
      %p119 = scmp.lt.s32.totalorder %s16, 6
      %p120 = pnand %p118, %p119
      %p121 = pneg %p120
      // Predicated region
      $region9: #{tpu_custom_call.1} parent=5 // pred_check
        _
      $region10: #{tpu_custom_call.1} parent=5 // pred_check_branch
        %123 = sbr.rel (%p120) target = $region12
      $region11: #{tpu_custom_call.1} parent=5 // pred_region
        %s124 = ssub.s32 %s16, 1
        // Predicated region
        $region13: #{tpu_custom_call.1} parent=11 // pred_check
          %p125 = pneg %p63
        $region14: #{tpu_custom_call.1} parent=11 // pred_check_branch
          %127 = sbr.rel (%p125) target = $region16
        $region15: #{tpu_custom_call.1} parent=11 // pred_region
          %129 = vsyncadd [#allocation6], 0
          %s130 = sshll.u32 %s1, 4
          %s131 = int_to_ptr.hbm [resolvable:$true] %s130
          %s132 = sshll.u32 [#allocation5], 4
          %s133 = int_to_ptr.vmem [resolvable:$true] %s132
          %138 = dma.hbm_to_vmem [thread:$0]  %s131, 4096, %s133, [#allocation6], 256, 256, 16
        $region16: #{tpu_custom_call.1} parent=11 // pred_fallthru
          _
        // Predicated region
        $region17: #{tpu_custom_call.1} parent=11 // pred_check
          %p139 = pneg %p84
        $region18: #{tpu_custom_call.1} parent=11 // pred_check_branch
          %141 = sbr.rel (%p139) target = $region20
        $region19: #{tpu_custom_call.1} parent=11 // pred_region
          %143 = vsyncadd [#allocation6], 0
          %s145 = sshll.u32 %s2, 4
          %s146 = int_to_ptr.hbm [resolvable:$true] %s145
          %s147 = sshll.u32 [#allocation7], 4
          %s148 = int_to_ptr.vmem [resolvable:$true] %s147
          %150 = dma.hbm_to_vmem [thread:$0]  %s146, 64, %s148, [#allocation6]
        $region20: #{tpu_custom_call.1} parent=11 // pred_fallthru
          _
      $region12: #{tpu_custom_call.1} parent=5 // pred_fallthru
        _
      %p151 = scmp.lt.s32.totalorder %s16, 5
      // Predicated region
      $region21: #{tpu_custom_call.1} parent=5 // pred_check
        %p152 = pneg %p151
      $region22: #{tpu_custom_call.1} parent=5 // pred_check_branch
        %154 = sbr.rel (%p152) target = $region24
      $region23: #{tpu_custom_call.1} parent=5 // pred_region
        // Predicated region
        $region25: #{tpu_custom_call.1} parent=23 // pred_check
          %p155 = pneg %p36
        $region26: #{tpu_custom_call.1} parent=23 // pred_check_branch
          %157 = sbr.rel (%p155) target = $region28
        $region27: #{tpu_custom_call.1} parent=23 // pred_region
          %s158 = sand.u32 %s26, 1
          %s159 = scalar_lea.sflag [#allocation3], %s158
          %s160 = sand.u32 %s26, 1
          %s161 = smul.addr %s160, 64
          %s162 = scalar_lea.vmem [#allocation2], %s161
          %s163 = smul.u32 8, %s16
          %165 = vsyncadd %s159, 0
          %s166 = smul.addr %s163, 8
          %s167 = scalar_lea.hbm %s0, %s166
          %s168 = sshll.u32 %s167, 4
          %s169 = int_to_ptr.hbm [resolvable:$true] %s168
          %s170 = sshll.u32 %s162, 4
          %s171 = int_to_ptr.vmem [resolvable:$true] %s170
          %176 = dma.hbm_to_vmem [thread:$0]  %s169, 1024, %s171, %s159, 128, 128, 8
        $region28: #{tpu_custom_call.1} parent=23 // pred_fallthru
          _
      $region24: #{tpu_custom_call.1} parent=5 // pred_fallthru
        _
      %p177 = scmp.le.s32.totalorder 1, %s16
      %p178 = scmp.lt.s32.totalorder %s16, 6
      %p179 = pnand %p177, %p178
      %p180 = pneg %p179
      // Predicated region
      $region29: #{tpu_custom_call.1} parent=5 // pred_check
        _
      $region30: #{tpu_custom_call.1} parent=5 // pred_check_branch
        %182 = sbr.rel (%p179) target = $region32
      $region31: #{tpu_custom_call.1} parent=5 // pred_region
        %s183 = ssub.s32 %s16, 1
        %s184 = sand.u32 %s29, 1
        %s185 = scalar_lea.sflag [#allocation3], %s184
        %s186 = sand.u32 %s29, 1
        %s187 = smul.addr %s186, 64
        %s188 = scalar_lea.vmem [#allocation2], %s187
        // Predicated region
        $region33: #{tpu_custom_call.1} parent=31 // pred_check
          %p189 = pneg %p42
        $region34: #{tpu_custom_call.1} parent=31 // pred_check_branch
          %191 = sbr.rel (%p189) target = $region36
        $region35: #{tpu_custom_call.1} parent=31 // pred_region
          %193 = dma.done %s185, 1024
        $region36: #{tpu_custom_call.1} parent=31 // pred_fallthru
          _
        // Predicated region
        $region37: #{tpu_custom_call.1} parent=31 // pred_check
          %p194 = pneg %p63
        $region38: #{tpu_custom_call.1} parent=31 // pred_check_branch
          %196 = sbr.rel (%p194) target = $region40
        $region39: #{tpu_custom_call.1} parent=31 // pred_region
          %198 = dma.done [#allocation6], 4096
        $region40: #{tpu_custom_call.1} parent=31 // pred_fallthru
          _
        // Predicated region
        $region41: #{tpu_custom_call.1} parent=31 // pred_check
          %p199 = pneg %p84
        $region42: #{tpu_custom_call.1} parent=31 // pred_check_branch
          %201 = sbr.rel (%p199) target = $region44
        $region43: #{tpu_custom_call.1} parent=31 // pred_region
          %203 = dma.done [#allocation6], 64
        $region44: #{tpu_custom_call.1} parent=31 // pred_fallthru
          _
        %s204 = sand.u32 %s29, 1
        %s205 = scalar_lea.sflag [#allocation3], %s204
        %s206 = sand.u32 %s29, 1
        %s207 = smul.addr %s206, 64
        %s208 = scalar_lea.vmem [#allocation2], %s207
        %p209 = pneg %p42
        %p210 = pneg %p39
        %p211 = pneg %p63
        %p212 = pneg %p60
        %p213 = pneg %p84
        %p214 = pneg %p81
        %p215 = pneg %p110
        %p216 = pneg %p107
        %s217 = sand.u32 %s97, 1
        %s218 = scalar_lea.sflag [#allocation4], %s217
        %s219 = sand.u32 %s97, 1
        %s220 = smul.addr %s219, 256
        %s221 = scalar_lea.vmem [#allocation8], %s220
        %s222 = smul.u32 8, %s21
        %s223 = smul.u32 8, %s21
        %v224 = vld [vmem:[%s188] sm:$0xff]
        %v225 = vld [vmem:[%s188 + $0x8] sm:$0xff]
        %v226 = vld [vmem:[%s188 + $0x10] sm:$0xff]
        %v227 = vld [vmem:[%s188 + $0x18] sm:$0xff]
        %v228 = vld [vmem:[%s188 + $0x20] sm:$0xff]
        %v229 = vld [vmem:[%s188 + $0x28] sm:$0xff]
        %v230 = vld [vmem:[%s188 + $0x30] sm:$0xff]
        %v231 = vld [vmem:[%s188 + $0x38] sm:$0xff]
        %v232 = vpack.c.bf16 %v225, %v224
        %v233 = vpack.c.bf16 %v227, %v226
        %v234 = vpack.c.bf16 %v229, %v228
        %v235 = vpack.c.bf16 %v231, %v230
        %v236 = vld [vmem:[#allocation5] sm:$0xff]
        %v237 = vld [vmem:[#allocation5 + $0x8] sm:$0xff]
        %v238 = vld [vmem:[#allocation5 + $0x10] sm:$0xff]
        %v239 = vld [vmem:[#allocation5 + $0x18] sm:$0xff]
        %v240 = vld [vmem:[#allocation5 + $0x20] sm:$0xff]
        %v241 = vld [vmem:[#allocation5 + $0x28] sm:$0xff]
        %v242 = vld [vmem:[#allocation5 + $0x30] sm:$0xff]
        %v243 = vld [vmem:[#allocation5 + $0x38] sm:$0xff]
        %v244 = vld [vmem:[#allocation5 + $0x40] sm:$0xff]
        %v245 = vld [vmem:[#allocation5 + $0x48] sm:$0xff]
        %v246 = vld [vmem:[#allocation5 + $0x50] sm:$0xff]
        %v247 = vld [vmem:[#allocation5 + $0x58] sm:$0xff]
        %v248 = vld [vmem:[#allocation5 + $0x60] sm:$0xff]
        %v249 = vld [vmem:[#allocation5 + $0x68] sm:$0xff]
        %v250 = vld [vmem:[#allocation5 + $0x70] sm:$0xff]
        %v251 = vld [vmem:[#allocation5 + $0x78] sm:$0xff]
        %v252 = vld [vmem:[#allocation5 + $0x80] sm:$0xff]
        %v253 = vld [vmem:[#allocation5 + $0x88] sm:$0xff]
        %v254 = vld [vmem:[#allocation5 + $0x90] sm:$0xff]
        %v255 = vld [vmem:[#allocation5 + $0x98] sm:$0xff]
        %v256 = vld [vmem:[#allocation5 + $0xa0] sm:$0xff]
        %v257 = vld [vmem:[#allocation5 + $0xa8] sm:$0xff]
        %v258 = vld [vmem:[#allocation5 + $0xb0] sm:$0xff]
        %v259 = vld [vmem:[#allocation5 + $0xb8] sm:$0xff]
        %v260 = vld [vmem:[#allocation5 + $0xc0] sm:$0xff]
        %v261 = vld [vmem:[#allocation5 + $0xc8] sm:$0xff]
        %v262 = vld [vmem:[#allocation5 + $0xd0] sm:$0xff]
        %v263 = vld [vmem:[#allocation5 + $0xd8] sm:$0xff]
        %v264 = vld [vmem:[#allocation5 + $0xe0] sm:$0xff]
        %v265 = vld [vmem:[#allocation5 + $0xe8] sm:$0xff]
        %v266 = vld [vmem:[#allocation5 + $0xf0] sm:$0xff]
        %v267 = vld [vmem:[#allocation5 + $0xf8] sm:$0xff]
        %v268 = vld [vmem:[#allocation7] sm:$0xf]
        %v270 = vperm.slane %v268, 0
        %v271 = vperm.slane %v268, 1
        %v272 = vperm.slane %v268, 2
        %v273 = vperm.slane %v268, 3
        %v310 = vunpack.c.l.b16 %v236
        %v311 = vunpack.c.h.b16 %v236
        %v312 = vunpack.c.l.b16 %v237
        %v313 = vunpack.c.h.b16 %v237
        %v314 = vunpack.c.l.b16 %v238
        %v315 = vunpack.c.h.b16 %v238
        %v316 = vunpack.c.l.b16 %v239
        %v317 = vunpack.c.h.b16 %v239
        %v318 = vunpack.c.l.b16 %v240
        %v319 = vunpack.c.h.b16 %v240
        %v320 = vunpack.c.l.b16 %v241
        %v321 = vunpack.c.h.b16 %v241
        %v322 = vunpack.c.l.b16 %v242
        %v323 = vunpack.c.h.b16 %v242
        %v324 = vunpack.c.l.b16 %v243
        %v325 = vunpack.c.h.b16 %v243
        %v326 = vunpack.c.l.b16 %v244
        %v327 = vunpack.c.h.b16 %v244
        %v328 = vunpack.c.l.b16 %v245
        %v329 = vunpack.c.h.b16 %v245
        %v330 = vunpack.c.l.b16 %v246
        %v331 = vunpack.c.h.b16 %v246
        %v332 = vunpack.c.l.b16 %v247
        %v333 = vunpack.c.h.b16 %v247
        %v334 = vunpack.c.l.b16 %v248
        %v335 = vunpack.c.h.b16 %v248
        %v336 = vunpack.c.l.b16 %v249
        %v337 = vunpack.c.h.b16 %v249
        %v338 = vunpack.c.l.b16 %v250
        %v339 = vunpack.c.h.b16 %v250
        %v340 = vunpack.c.l.b16 %v251
        %v341 = vunpack.c.h.b16 %v251
        %v342 = vunpack.c.l.b16 %v252
        %v343 = vunpack.c.h.b16 %v252
        %v344 = vunpack.c.l.b16 %v253
        %v345 = vunpack.c.h.b16 %v253
        %v346 = vunpack.c.l.b16 %v254
        %v347 = vunpack.c.h.b16 %v254
        %v348 = vunpack.c.l.b16 %v255
        %v349 = vunpack.c.h.b16 %v255
        %v350 = vunpack.c.l.b16 %v256
        %v351 = vunpack.c.h.b16 %v256
        %v352 = vunpack.c.l.b16 %v257
        %v353 = vunpack.c.h.b16 %v257
        %v354 = vunpack.c.l.b16 %v258
        %v355 = vunpack.c.h.b16 %v258
        %v356 = vunpack.c.l.b16 %v259
        %v357 = vunpack.c.h.b16 %v259
        %v358 = vunpack.c.l.b16 %v260
        %v359 = vunpack.c.h.b16 %v260
        %v360 = vunpack.c.l.b16 %v261
        %v361 = vunpack.c.h.b16 %v261
        %v362 = vunpack.c.l.b16 %v262
        %v363 = vunpack.c.h.b16 %v262
        %v364 = vunpack.c.l.b16 %v263
        %v365 = vunpack.c.h.b16 %v263
        %v366 = vunpack.c.l.b16 %v264
        %v367 = vunpack.c.h.b16 %v264
        %v368 = vunpack.c.l.b16 %v265
        %v369 = vunpack.c.h.b16 %v265
        %v370 = vunpack.c.l.b16 %v266
        %v371 = vunpack.c.h.b16 %v266
        %v372 = vunpack.c.l.b16 %v267
        %v373 = vunpack.c.h.b16 %v267
        %v374 = vpack.c.b16 %v314, %v310
        %v375 = vpack.c.b16 %v315, %v311
        %v376 = vpack.c.b16 %v316, %v312
        %v377 = vpack.c.b16 %v317, %v313
        %v378 = vpack.c.b16 %v322, %v318
        %v379 = vpack.c.b16 %v323, %v319
        %v380 = vpack.c.b16 %v324, %v320
        %v381 = vpack.c.b16 %v325, %v321
        %v382 = vpack.c.b16 %v330, %v326
        %v383 = vpack.c.b16 %v331, %v327
        %v384 = vpack.c.b16 %v332, %v328
        %v385 = vpack.c.b16 %v333, %v329
        %v386 = vpack.c.b16 %v338, %v334
        %v387 = vpack.c.b16 %v339, %v335
        %v388 = vpack.c.b16 %v340, %v336
        %v389 = vpack.c.b16 %v341, %v337
        %v390 = vpack.c.b16 %v346, %v342
        %v391 = vpack.c.b16 %v347, %v343
        %v392 = vpack.c.b16 %v348, %v344
        %v393 = vpack.c.b16 %v349, %v345
        %v394 = vpack.c.b16 %v354, %v350
        %v395 = vpack.c.b16 %v355, %v351
        %v396 = vpack.c.b16 %v356, %v352
        %v397 = vpack.c.b16 %v357, %v353
        %v398 = vpack.c.b16 %v362, %v358
        %v399 = vpack.c.b16 %v363, %v359
        %v400 = vpack.c.b16 %v364, %v360
        %v401 = vpack.c.b16 %v365, %v361
        %v402 = vpack.c.b16 %v370, %v366
        %v403 = vpack.c.b16 %v371, %v367
        %v404 = vpack.c.b16 %v372, %v368
        %v405 = vpack.c.b16 %v373, %v369
        %438 = vmatpush.bf16.msra.mxu0 %v402
        %439 = vmatpush.bf16.msra.mxu0 %v398
        %440 = vmatpush.bf16.msra.mxu0 %v394
        %441 = vmatpush.bf16.msra.mxu0 %v390
        %442 = vmatpush.bf16.msra.mxu0 %v386
        %443 = vmatpush.bf16.msra.mxu0 %v382
        %444 = vmatpush.bf16.msra.mxu0 %v378
        %445 = vmatpush.bf16.msra.mxu0 %v374
        %446 = vmatmul.bf16.gmra.mxu0 %v232
        %v447 = vpop.f32.mrf.mxu0
        %v448 = vadd.f32 %v270, %v447
        %v449 = vpop.f32.mrf.mxu0
        %v450 = vadd.f32 %v270, %v449
        %451 = vmatmul.bf16.gmra.mxu0 %v233
        %v452 = vpop.f32.mrf.mxu0
        %v453 = vadd.f32 %v270, %v452
        %v454 = vpop.f32.mrf.mxu0
        %v455 = vadd.f32 %v270, %v454
        %456 = vmatmul.bf16.gmra.mxu0 %v234
        %v457 = vpop.f32.mrf.mxu0
        %v458 = vadd.f32 %v270, %v457
        %v459 = vpop.f32.mrf.mxu0
        %v460 = vadd.f32 %v270, %v459
        %461 = vmatmul.bf16.gmra.mxu0 %v235
        %v462 = vpop.f32.mrf.mxu0
        %v463 = vadd.f32 %v270, %v462
        %v464 = vpop.f32.mrf.mxu0
        %v465 = vadd.f32 %v270, %v464
        %466 = vdwg.mxu0
        %467 = vmatpush.bf16.msra.mxu0 %v403
        %468 = vmatpush.bf16.msra.mxu0 %v399
        %469 = vmatpush.bf16.msra.mxu0 %v395
        %470 = vmatpush.bf16.msra.mxu0 %v391
        %471 = vmatpush.bf16.msra.mxu0 %v387
        %472 = vmatpush.bf16.msra.mxu0 %v383
        %473 = vmatpush.bf16.msra.mxu0 %v379
        %474 = vmatpush.bf16.msra.mxu0 %v375
        %475 = vmatmul.bf16.gmra.mxu0 %v232
        %v476 = vpop.f32.mrf.mxu0
        %v477 = vadd.f32 %v271, %v476
        %v478 = vpop.f32.mrf.mxu0
        %v479 = vadd.f32 %v271, %v478
        %480 = vmatmul.bf16.gmra.mxu0 %v233
        %v481 = vpop.f32.mrf.mxu0
        %v482 = vadd.f32 %v271, %v481
        %v483 = vpop.f32.mrf.mxu0
        %v484 = vadd.f32 %v271, %v483
        %485 = vmatmul.bf16.gmra.mxu0 %v234
        %v486 = vpop.f32.mrf.mxu0
        %v487 = vadd.f32 %v271, %v486
        %v488 = vpop.f32.mrf.mxu0
        %v489 = vadd.f32 %v271, %v488
        %490 = vmatmul.bf16.gmra.mxu0 %v235
        %v491 = vpop.f32.mrf.mxu0
        %v492 = vadd.f32 %v271, %v491
        %v493 = vpop.f32.mrf.mxu0
        %v494 = vadd.f32 %v271, %v493
        %495 = vdwg.mxu0
        %496 = vmatpush.bf16.msra.mxu0 %v404
        %497 = vmatpush.bf16.msra.mxu0 %v400
        %498 = vmatpush.bf16.msra.mxu0 %v396
        %499 = vmatpush.bf16.msra.mxu0 %v392
        %500 = vmatpush.bf16.msra.mxu0 %v388
        %501 = vmatpush.bf16.msra.mxu0 %v384
        %502 = vmatpush.bf16.msra.mxu0 %v380
        %503 = vmatpush.bf16.msra.mxu0 %v376
        %504 = vmatmul.bf16.gmra.mxu0 %v232
        %v505 = vpop.f32.mrf.mxu0
        %v506 = vadd.f32 %v272, %v505
        %v507 = vpop.f32.mrf.mxu0
        %v508 = vadd.f32 %v272, %v507
        %509 = vmatmul.bf16.gmra.mxu0 %v233
        %v510 = vpop.f32.mrf.mxu0
        %v511 = vadd.f32 %v272, %v510
        %v512 = vpop.f32.mrf.mxu0
        %v513 = vadd.f32 %v272, %v512
        %514 = vmatmul.bf16.gmra.mxu0 %v234
        %v515 = vpop.f32.mrf.mxu0
        %v516 = vadd.f32 %v272, %v515
        %v517 = vpop.f32.mrf.mxu0
        %v518 = vadd.f32 %v272, %v517
        %519 = vmatmul.bf16.gmra.mxu0 %v235
        %v520 = vpop.f32.mrf.mxu0
        %v521 = vadd.f32 %v272, %v520
        %v522 = vpop.f32.mrf.mxu0
        %v523 = vadd.f32 %v272, %v522
        %524 = vdwg.mxu0
        %525 = vmatpush.bf16.msra.mxu0 %v405
        %526 = vmatpush.bf16.msra.mxu0 %v401
        %527 = vmatpush.bf16.msra.mxu0 %v397
        %528 = vmatpush.bf16.msra.mxu0 %v393
        %529 = vmatpush.bf16.msra.mxu0 %v389
        %530 = vmatpush.bf16.msra.mxu0 %v385
        %531 = vmatpush.bf16.msra.mxu0 %v381
        %532 = vmatpush.bf16.msra.mxu0 %v377
        %533 = vmatmul.bf16.gmra.mxu0 %v232
        %v534 = vpop.f32.mrf.mxu0
        %v535 = vadd.f32 %v273, %v534
        %v536 = vpop.f32.mrf.mxu0
        %v537 = vadd.f32 %v273, %v536
        %538 = vmatmul.bf16.gmra.mxu0 %v233
        %v539 = vpop.f32.mrf.mxu0
        %v540 = vadd.f32 %v273, %v539
        %v541 = vpop.f32.mrf.mxu0
        %v542 = vadd.f32 %v273, %v541
        %543 = vmatmul.bf16.gmra.mxu0 %v234
        %v544 = vpop.f32.mrf.mxu0
        %v545 = vadd.f32 %v273, %v544
        %v546 = vpop.f32.mrf.mxu0
        %v547 = vadd.f32 %v273, %v546
        %548 = vmatmul.bf16.gmra.mxu0 %v235
        %v549 = vpop.f32.mrf.mxu0
        %v550 = vadd.f32 %v273, %v549
        %v551 = vpop.f32.mrf.mxu0
        %v552 = vadd.f32 %v273, %v551
        %553 = vdwg.mxu0
        %v554 = vadd.f32 %v448, %v477
        %v555 = vadd.f32 %v554, %v506
        %v556 = vadd.f32 %v555, %v535
        %557 = vadd.xlane.f32.xlu0 %v556
        %v558 = vpop.xlane.xlu0 %557
        %v559 = vadd.f32 %v450, %v479
        %v560 = vadd.f32 %v559, %v508
        %v561 = vadd.f32 %v560, %v537
        %562 = vadd.xlane.f32.xlu0 %v561
        %v563 = vpop.xlane.xlu0 %562
        %v564 = vadd.f32 %v453, %v482
        %v565 = vadd.f32 %v564, %v511
        %v566 = vadd.f32 %v565, %v540
        %567 = vadd.xlane.f32.xlu0 %v566
        %v568 = vpop.xlane.xlu0 %567
        %v569 = vadd.f32 %v455, %v484
        %v570 = vadd.f32 %v569, %v513
        %v571 = vadd.f32 %v570, %v542
        %572 = vadd.xlane.f32.xlu0 %v571
        %v573 = vpop.xlane.xlu0 %572
        %v574 = vadd.f32 %v458, %v487
        %v575 = vadd.f32 %v574, %v516
        %v576 = vadd.f32 %v575, %v545
        %577 = vadd.xlane.f32.xlu0 %v576
        %v578 = vpop.xlane.xlu0 %577
        %v579 = vadd.f32 %v460, %v489
        %v580 = vadd.f32 %v579, %v518
        %v581 = vadd.f32 %v580, %v547
        %582 = vadd.xlane.f32.xlu0 %v581
        %v583 = vpop.xlane.xlu0 %582
        %v584 = vadd.f32 %v463, %v492
        %v585 = vadd.f32 %v584, %v521
        %v586 = vadd.f32 %v585, %v550
        %587 = vadd.xlane.f32.xlu0 %v586
        %v588 = vpop.xlane.xlu0 %587
        %v589 = vadd.f32 %v465, %v494
        %v590 = vadd.f32 %v589, %v523
        %v591 = vadd.f32 %v590, %v552
        %592 = vadd.xlane.f32.xlu0 %v591
        %v593 = vpop.xlane.xlu0 %592
        %v594 = vrcp.pop 512.0
        %v595 = vmul.f32 512.0, %v594
        %v596 = vsub.f32 1.0, %v595
        %v597 = vmul.f32 %v594, %v596
        %v598 = vadd.f32 %v594, %v597
        %vm599 = vweird.f32 %v594
        %v600 = vsel %vm599, %v594, %v598
        %v601 = vmul.f32 %v558, %v600
        %v602 = vmul.f32 %v563, %v600
        %v603 = vmul.f32 %v568, %v600
        %v604 = vmul.f32 %v573, %v600
        %v605 = vmul.f32 %v578, %v600
        %v606 = vmul.f32 %v583, %v600
        %v607 = vmul.f32 %v588, %v600
        %v608 = vmul.f32 %v593, %v600
        %v609 = vsub.f32 %v448, %v601
        %v610 = vsub.f32 %v477, %v601
        %v611 = vsub.f32 %v506, %v601
        %v612 = vsub.f32 %v535, %v601
        %v613 = vsub.f32 %v450, %v602
        %v614 = vsub.f32 %v479, %v602
        %v615 = vsub.f32 %v508, %v602
        %v616 = vsub.f32 %v537, %v602
        %v617 = vsub.f32 %v453, %v603
        %v618 = vsub.f32 %v482, %v603
        %v619 = vsub.f32 %v511, %v603
        %v620 = vsub.f32 %v540, %v603
        %v621 = vsub.f32 %v455, %v604
        %v622 = vsub.f32 %v484, %v604
        %v623 = vsub.f32 %v513, %v604
        %v624 = vsub.f32 %v542, %v604
        %v625 = vsub.f32 %v458, %v605
        %v626 = vsub.f32 %v487, %v605
        %v627 = vsub.f32 %v516, %v605
        %v628 = vsub.f32 %v545, %v605
        %v629 = vsub.f32 %v460, %v606
        %v630 = vsub.f32 %v489, %v606
        %v631 = vsub.f32 %v518, %v606
        %v632 = vsub.f32 %v547, %v606
        %v633 = vsub.f32 %v463, %v607
        %v634 = vsub.f32 %v492, %v607
        %v635 = vsub.f32 %v521, %v607
        %v636 = vsub.f32 %v550, %v607
        %v637 = vsub.f32 %v465, %v608
        %v638 = vsub.f32 %v494, %v608
        %v639 = vsub.f32 %v523, %v608
        %v640 = vsub.f32 %v552, %v608
        %v641 = vmul.f32 %v609, %v609
        %v642 = vmul.f32 %v610, %v610
        %v643 = vmul.f32 %v611, %v611
        %v644 = vmul.f32 %v612, %v612
        %v645 = vmul.f32 %v613, %v613
        %v646 = vmul.f32 %v614, %v614
        %v647 = vmul.f32 %v615, %v615
        %v648 = vmul.f32 %v616, %v616
        %v649 = vmul.f32 %v617, %v617
        %v650 = vmul.f32 %v618, %v618
        %v651 = vmul.f32 %v619, %v619
        %v652 = vmul.f32 %v620, %v620
        %v653 = vmul.f32 %v621, %v621
        %v654 = vmul.f32 %v622, %v622
        %v655 = vmul.f32 %v623, %v623
        %v656 = vmul.f32 %v624, %v624
        %v657 = vmul.f32 %v625, %v625
        %v658 = vmul.f32 %v626, %v626
        %v659 = vmul.f32 %v627, %v627
        %v660 = vmul.f32 %v628, %v628
        %v661 = vmul.f32 %v629, %v629
        %v662 = vmul.f32 %v630, %v630
        %v663 = vmul.f32 %v631, %v631
        %v664 = vmul.f32 %v632, %v632
        %v665 = vmul.f32 %v633, %v633
        %v666 = vmul.f32 %v634, %v634
        %v667 = vmul.f32 %v635, %v635
        %v668 = vmul.f32 %v636, %v636
        %v669 = vmul.f32 %v637, %v637
        %v670 = vmul.f32 %v638, %v638
        %v671 = vmul.f32 %v639, %v639
        %v672 = vmul.f32 %v640, %v640
        %v673 = vadd.f32 %v641, %v642
        %v674 = vadd.f32 %v673, %v643
        %v675 = vadd.f32 %v674, %v644
        %676 = vadd.xlane.f32.xlu0 %v675
        %v677 = vpop.xlane.xlu0 %676
        %v678 = vadd.f32 %v645, %v646
        %v679 = vadd.f32 %v678, %v647
        %v680 = vadd.f32 %v679, %v648
        %681 = vadd.xlane.f32.xlu0 %v680
        %v682 = vpop.xlane.xlu0 %681
        %v683 = vadd.f32 %v649, %v650
        %v684 = vadd.f32 %v683, %v651
        %v685 = vadd.f32 %v684, %v652
        %686 = vadd.xlane.f32.xlu0 %v685
        %v687 = vpop.xlane.xlu0 %686
        %v688 = vadd.f32 %v653, %v654
        %v689 = vadd.f32 %v688, %v655
        %v690 = vadd.f32 %v689, %v656
        %691 = vadd.xlane.f32.xlu0 %v690
        %v692 = vpop.xlane.xlu0 %691
        %v693 = vadd.f32 %v657, %v658
        %v694 = vadd.f32 %v693, %v659
        %v695 = vadd.f32 %v694, %v660
        %696 = vadd.xlane.f32.xlu0 %v695
        %v697 = vpop.xlane.xlu0 %696
        %v698 = vadd.f32 %v661, %v662
        %v699 = vadd.f32 %v698, %v663
        %v700 = vadd.f32 %v699, %v664
        %701 = vadd.xlane.f32.xlu0 %v700
        %v702 = vpop.xlane.xlu0 %701
        %v703 = vadd.f32 %v665, %v666
        %v704 = vadd.f32 %v703, %v667
        %v705 = vadd.f32 %v704, %v668
        %706 = vadd.xlane.f32.xlu0 %v705
        %v707 = vpop.xlane.xlu0 %706
        %v708 = vadd.f32 %v669, %v670
        %v709 = vadd.f32 %v708, %v671
        %v710 = vadd.f32 %v709, %v672
        %711 = vadd.xlane.f32.xlu0 %v710
        %v712 = vpop.xlane.xlu0 %711
        %v713 = vmul.f32 %v677, %v600
        %v714 = vmul.f32 %v682, %v600
        %v715 = vmul.f32 %v687, %v600
        %v716 = vmul.f32 %v692, %v600
        %v717 = vmul.f32 %v697, %v600
        %v718 = vmul.f32 %v702, %v600
        %v719 = vmul.f32 %v707, %v600
        %v720 = vmul.f32 %v712, %v600
        %v721 = vadd.f32 %v713, 1e-05
        %v722 = vadd.f32 %v714, 1e-05
        %v723 = vadd.f32 %v715, 1e-05
        %v724 = vadd.f32 %v716, 1e-05
        %v725 = vadd.f32 %v717, 1e-05
        %v726 = vadd.f32 %v718, 1e-05
        %v727 = vadd.f32 %v719, 1e-05
        %v728 = vadd.f32 %v720, 1e-05
        %v729 = vrsqrt.pop %v721
        %v730 = vmul.f32 %v729, %v721
        %v731 = vmul.f32 %v730, %v729
        %v732 = vmul.f32 0.5, %v731
        %v733 = vsub.f32 1.5, %v732
        %v734 = vmul.f32 %v729, %v733
        %vm735 = vweird.f32 %v721
        %vm736 = vweird.f32 %v729
        %vm737 = vmor %vm735, %vm736
        %v738 = vsel %vm737, %v729, %v734
        %v739 = vrsqrt.pop %v722
        %v740 = vmul.f32 %v739, %v722
        %v741 = vmul.f32 %v740, %v739
        %v742 = vmul.f32 0.5, %v741
        %v743 = vsub.f32 1.5, %v742
        %v744 = vmul.f32 %v739, %v743
        %vm745 = vweird.f32 %v722
        %vm746 = vweird.f32 %v739
        %vm747 = vmor %vm745, %vm746
        %v748 = vsel %vm747, %v739, %v744
        %v749 = vrsqrt.pop %v723
        %v750 = vmul.f32 %v749, %v723
        %v751 = vmul.f32 %v750, %v749
        %v752 = vmul.f32 0.5, %v751
        %v753 = vsub.f32 1.5, %v752
        %v754 = vmul.f32 %v749, %v753
        %vm755 = vweird.f32 %v723
        %vm756 = vweird.f32 %v749
        %vm757 = vmor %vm755, %vm756
        %v758 = vsel %vm757, %v749, %v754
        %v759 = vrsqrt.pop %v724
        %v760 = vmul.f32 %v759, %v724
        %v761 = vmul.f32 %v760, %v759
        %v762 = vmul.f32 0.5, %v761
        %v763 = vsub.f32 1.5, %v762
        %v764 = vmul.f32 %v759, %v763
        %vm765 = vweird.f32 %v724
        %vm766 = vweird.f32 %v759
        %vm767 = vmor %vm765, %vm766
        %v768 = vsel %vm767, %v759, %v764
        %v769 = vrsqrt.pop %v725
        %v770 = vmul.f32 %v769, %v725
        %v771 = vmul.f32 %v770, %v769
        %v772 = vmul.f32 0.5, %v771
        %v773 = vsub.f32 1.5, %v772
        %v774 = vmul.f32 %v769, %v773
        %vm775 = vweird.f32 %v725
        %vm776 = vweird.f32 %v769
        %vm777 = vmor %vm775, %vm776
        %v778 = vsel %vm777, %v769, %v774
        %v779 = vrsqrt.pop %v726
        %v780 = vmul.f32 %v779, %v726
        %v781 = vmul.f32 %v780, %v779
        %v782 = vmul.f32 0.5, %v781
        %v783 = vsub.f32 1.5, %v782
        %v784 = vmul.f32 %v779, %v783
        %vm785 = vweird.f32 %v726
        %vm786 = vweird.f32 %v779
        %vm787 = vmor %vm785, %vm786
        %v788 = vsel %vm787, %v779, %v784
        %v789 = vrsqrt.pop %v727
        %v790 = vmul.f32 %v789, %v727
        %v791 = vmul.f32 %v790, %v789
        %v792 = vmul.f32 0.5, %v791
        %v793 = vsub.f32 1.5, %v792
        %v794 = vmul.f32 %v789, %v793
        %vm795 = vweird.f32 %v727
        %vm796 = vweird.f32 %v789
        %vm797 = vmor %vm795, %vm796
        %v798 = vsel %vm797, %v789, %v794
        %v799 = vrsqrt.pop %v728
        %v800 = vmul.f32 %v799, %v728
        %v801 = vmul.f32 %v800, %v799
        %v802 = vmul.f32 0.5, %v801
        %v803 = vsub.f32 1.5, %v802
        %v804 = vmul.f32 %v799, %v803
        %vm805 = vweird.f32 %v728
        %vm806 = vweird.f32 %v799
        %vm807 = vmor %vm805, %vm806
        %v808 = vsel %vm807, %v799, %v804
        %v809 = vmul.f32 %v609, %v738
        %v810 = vmul.f32 %v610, %v738
        %v811 = vmul.f32 %v611, %v738
        %v812 = vmul.f32 %v612, %v738
        %v813 = vmul.f32 %v613, %v748
        %v814 = vmul.f32 %v614, %v748
        %v815 = vmul.f32 %v615, %v748
        %v816 = vmul.f32 %v616, %v748
        %v817 = vmul.f32 %v617, %v758
        %v818 = vmul.f32 %v618, %v758
        %v819 = vmul.f32 %v619, %v758
        %v820 = vmul.f32 %v620, %v758
        %v821 = vmul.f32 %v621, %v768
        %v822 = vmul.f32 %v622, %v768
        %v823 = vmul.f32 %v623, %v768
        %v824 = vmul.f32 %v624, %v768
        %v825 = vmul.f32 %v625, %v778
        %v826 = vmul.f32 %v626, %v778
        %v827 = vmul.f32 %v627, %v778
        %v828 = vmul.f32 %v628, %v778
        %v829 = vmul.f32 %v629, %v788
        %v830 = vmul.f32 %v630, %v788
        %v831 = vmul.f32 %v631, %v788
        %v832 = vmul.f32 %v632, %v788
        %v833 = vmul.f32 %v633, %v798
        %v834 = vmul.f32 %v634, %v798
        %v835 = vmul.f32 %v635, %v798
        %v836 = vmul.f32 %v636, %v798
        %v837 = vmul.f32 %v637, %v808
        %v838 = vmul.f32 %v638, %v808
        %v839 = vmul.f32 %v639, %v808
        %v840 = vmul.f32 %v640, %v808
        %841 = vst [vmem:[%s221] sm:$0xff] %v809
        %842 = vst [vmem:[%s221 + $0x8] sm:$0xff] %v810
        %843 = vst [vmem:[%s221 + $0x10] sm:$0xff] %v811
        %844 = vst [vmem:[%s221 + $0x18] sm:$0xff] %v812
        %845 = vst [vmem:[%s221 + $0x20] sm:$0xff] %v813
        %846 = vst [vmem:[%s221 + $0x28] sm:$0xff] %v814
        %847 = vst [vmem:[%s221 + $0x30] sm:$0xff] %v815
        %848 = vst [vmem:[%s221 + $0x38] sm:$0xff] %v816
        %849 = vst [vmem:[%s221 + $0x40] sm:$0xff] %v817
        %850 = vst [vmem:[%s221 + $0x48] sm:$0xff] %v818
        %851 = vst [vmem:[%s221 + $0x50] sm:$0xff] %v819
        %852 = vst [vmem:[%s221 + $0x58] sm:$0xff] %v820
        %853 = vst [vmem:[%s221 + $0x60] sm:$0xff] %v821
        %854 = vst [vmem:[%s221 + $0x68] sm:$0xff] %v822
        %855 = vst [vmem:[%s221 + $0x70] sm:$0xff] %v823
        %856 = vst [vmem:[%s221 + $0x78] sm:$0xff] %v824
        %857 = vst [vmem:[%s221 + $0x80] sm:$0xff] %v825
        %858 = vst [vmem:[%s221 + $0x88] sm:$0xff] %v826
        %859 = vst [vmem:[%s221 + $0x90] sm:$0xff] %v827
        %860 = vst [vmem:[%s221 + $0x98] sm:$0xff] %v828
        %861 = vst [vmem:[%s221 + $0xa0] sm:$0xff] %v829
        %862 = vst [vmem:[%s221 + $0xa8] sm:$0xff] %v830
        %863 = vst [vmem:[%s221 + $0xb0] sm:$0xff] %v831
        %864 = vst [vmem:[%s221 + $0xb8] sm:$0xff] %v832
        %865 = vst [vmem:[%s221 + $0xc0] sm:$0xff] %v833
        %866 = vst [vmem:[%s221 + $0xc8] sm:$0xff] %v834
        %867 = vst [vmem:[%s221 + $0xd0] sm:$0xff] %v835
        %868 = vst [vmem:[%s221 + $0xd8] sm:$0xff] %v836
        %869 = vst [vmem:[%s221 + $0xe0] sm:$0xff] %v837
        %870 = vst [vmem:[%s221 + $0xe8] sm:$0xff] %v838
        %871 = vst [vmem:[%s221 + $0xf0] sm:$0xff] %v839
        %872 = vst [vmem:[%s221 + $0xf8] sm:$0xff] %v840
        %s873 = sand.u32 %s97, 1
        %s874 = scalar_lea.sflag [#allocation4], %s873
        %s875 = sand.u32 %s97, 1
        %s876 = smul.addr %s875, 256
        %s877 = scalar_lea.vmem [#allocation8], %s876
        // Predicated region
        $region45: #{tpu_custom_call.1} parent=31 // pred_check
          %p878 = pneg %p107
        $region46: #{tpu_custom_call.1} parent=31 // pred_check_branch
          %880 = sbr.rel (%p878) target = $region48
        $region47: #{tpu_custom_call.1} parent=31 // pred_region
          %s881 = smul.u32 8, %s21
          %883 = vsyncadd %s874, 0
          %s884 = smul.addr %s881, 4
          %s885 = smul.addr %s884, 8
          %s886 = scalar_lea.hbm %s3, %s885
          %s887 = sshll.u32 %s877, 4
          %s888 = int_to_ptr.vmem [resolvable:$true] %s887
          %s889 = sshll.u32 %s886, 4
          %s890 = int_to_ptr.hbm [resolvable:$true] %s889
          %895 = dma.vmem_to_hbm [thread:$0]  %s888, 4096, %s890, %s874, 512, 512, 32
        $region48: #{tpu_custom_call.1} parent=31 // pred_fallthru
          _
      $region32: #{tpu_custom_call.1} parent=5 // pred_fallthru
        _
      %p896 = scmp.le.s32.totalorder 2, %s16
      // Predicated region
      $region49: #{tpu_custom_call.1} parent=5 // pred_check
        %p897 = pneg %p896
      $region50: #{tpu_custom_call.1} parent=5 // pred_check_branch
        %899 = sbr.rel (%p897) target = $region52
      $region51: #{tpu_custom_call.1} parent=5 // pred_region
        %s900 = ssub.s32 %s16, 2
        // Predicated region
        $region53: #{tpu_custom_call.1} parent=51 // pred_check
          %p901 = pneg %p113
        $region54: #{tpu_custom_call.1} parent=51 // pred_check_branch
          %903 = sbr.rel (%p901) target = $region56
        $region55: #{tpu_custom_call.1} parent=51 // pred_region
          %s904 = sand.u32 %s98, 1
          %s905 = scalar_lea.sflag [#allocation4], %s904
          %s906 = sand.u32 %s98, 1
          %s907 = smul.addr %s906, 256
          %s908 = scalar_lea.vmem [#allocation8], %s907
          %910 = dma.done %s905, 4096
        $region56: #{tpu_custom_call.1} parent=51 // pred_fallthru
          _
      $region52: #{tpu_custom_call.1} parent=5 // pred_fallthru
        _
    $region6: #{tpu_custom_call.1} parent=1 // loop_footer
      %s20 = sadd.s32 1, %s16
    $region7: #{tpu_custom_call.1} parent=1 // loop_footer_branch
      %15 = sbr.rel target = $region3
    $region8: #{tpu_custom_call.1} parent=1 // loop_exit
      _
    %911 = vsyncpa [#allocation3], 1
    %s912 = scalar_lea.sflag [#allocation3], 1
    %913 = vsyncpa %s912, 1
    %914 = vsyncpa [#allocation6], 1
    %915 = vsyncpa [#allocation4], 1
    %s916 = scalar_lea.sflag [#allocation4], 1
    %917 = vsyncpa %s916, 1

</llo_original>
